<compile_context>
chip_gen: v7x
topology: tpu7x:2x2x1
jax: 0.10.0
libtpu: 0.0.40
codegen_flags: <defaults>
</compile_context>

<pallas_src>
import math

import jax
import jax.numpy as jnp
import numpy as np
from jax.experimental import pallas as pl
from jax.experimental.pallas import tpu as pltpu

BATCH = 2
SEQ = 8
HIDDEN = 32
NUM_HEADS = 4
HEAD_DIM = HIDDEN // NUM_HEADS


def _attn_kernel(x_ref, w_qkv_ref, b_qkv_ref, w_proj_ref, b_proj_ref, o_ref):
    # Shapes (static, from refs):
    #   x_ref:      (S, D)          one batch's rows
    #   w_qkv_ref:  (3, H, D, hd)   c_attn weight, per-head column blocks
    #   b_qkv_ref:  (3, H, 1, hd)   c_attn bias, per-head
    #   w_proj_ref: (H, hd, D)      c_proj weight, per-head row blocks
    #   b_proj_ref: (1, D)          c_proj bias
    #   o_ref:      (S, D)
    seq, d = x_ref.shape
    _, n_heads, _, head_dim = w_qkv_ref.shape

    x = x_ref[...]                                                     # (S, D) f32
    xh = jnp.broadcast_to(x[None], (n_heads, seq, d))                  # (H, S, D), hoisted

    # QKV projection as batched-over-heads MXU matmuls (no lane slicing, no stack).
    def proj(c):
        return (jnp.einsum("hsd,hdk->hsk", xh, w_qkv_ref[c],
                           preferred_element_type=jnp.float32)
                + b_qkv_ref[c])                                        # (H, S, hd)

    q = proj(0)
    k = proj(1)
    v = proj(2)

    # Scaled scores + causal mask + softmax, all heads at once.
    scale = 1.0 / math.sqrt(float(head_dim))
    s = jnp.einsum("hqd,hkd->hqk", q, k,
                   preferred_element_type=jnp.float32) * scale         # (H, S, S)
    row = jax.lax.broadcasted_iota(jnp.int32, (seq, seq), 0)
    col = jax.lax.broadcasted_iota(jnp.int32, (seq, seq), 1)
    causal = row >= col                                                # (S, S), in-kernel
    s = jnp.where(causal[None, :, :], s, jnp.finfo(jnp.float32).min)   # module's mask value
    s = s - jnp.max(s, axis=-1, keepdims=True)
    p = jnp.exp(s)
    p = p / jnp.sum(p, axis=-1, keepdims=True)                         # exact softmax denom
    ctx = jnp.einsum("hqk,hkd->hqd", p, v,
                     preferred_element_type=jnp.float32)               # (H, S, hd)

    # Output projection: merge-heads @ W_proj == sum_h ctx_h @ W_proj_h.
    # One batched MXU push over heads, then a single leading-axis reduce
    # (replaces the 4-deep serial per-head accumulator chain).
    oh = jnp.einsum("hqd,hdn->hqn", ctx, w_proj_ref[...],
                    preferred_element_type=jnp.float32)                # (H, S, D)
    # TODO(synk): attn_dropout / resid_dropout are identity (eval mode).
    o_ref[...] = jnp.sum(oh, axis=0) + b_proj_ref[...]


def my_gpt2_attention(x, w_qkv, b_qkv, w_proj, b_proj, *, num_heads=NUM_HEADS):
    B, S, D = x.shape
    head_dim = D // num_heads

    # Wrapper-side (free) layout plumbing: per-head weight/bias blocks, so the kernel
    # only ever does leading-axis indexing (no lane-misaligned slices in-kernel).
    x2 = x.reshape(B * S, D)
    w_qkv_r = w_qkv.reshape(D, 3, num_heads, head_dim).transpose(1, 2, 0, 3)  # (3,H,D,hd)
    b_qkv_r = b_qkv.reshape(3, num_heads, 1, head_dim)                        # (3,H,1,hd)
    w_proj_r = w_proj.reshape(num_heads, head_dim, D)                         # (H,hd,D)
    b_proj_r = b_proj.reshape(1, D)

    full = lambda shape: pl.BlockSpec(shape, lambda b: (0,) * len(shape))

    out = pl.pallas_call(
        _attn_kernel,
        out_shape=jax.ShapeDtypeStruct((B * S, D), jnp.float32),
        grid=(B,),
        in_specs=[
            pl.BlockSpec((S, D), lambda b: (b, 0)),            # x rows of batch b
            full((3, num_heads, D, head_dim)),                 # c_attn weight (per head)
            full((3, num_heads, 1, head_dim)),                 # c_attn bias   (per head)
            full((num_heads, head_dim, D)),                    # c_proj weight (per head)
            full((1, D)),                                      # c_proj bias
        ],
        out_specs=pl.BlockSpec((S, D), lambda b: (b, 0)),
        compiler_params=pltpu.CompilerParams(
            # Per-batch blocks are independent -> parallel (gives v7x megacore sharding
            # once per-step work is large enough; harmless on v5e/v6e).
            dimension_semantics=("parallel",)),
    )(x2, w_qkv_r, b_qkv_r, w_proj_r, b_proj_r)
    return out.reshape(B, S, D)


def my_gpt2_attention_reference(x, w_qkv, b_qkv, w_proj, b_proj, *, num_heads=NUM_HEADS):
    """Pure-JAX mirror of MyGPT2Attention.forward (default path, eval mode)."""
    B, S, D = x.shape
    head_dim = D // num_heads
    qkv = x @ w_qkv + b_qkv
    q, k, v = jnp.split(qkv, 3, axis=-1)

    def split_heads(t):
        return t.reshape(B, S, num_heads, head_dim).transpose(0, 2, 1, 3)

    q, k, v = split_heads(q), split_heads(k), split_heads(v)
    s = jnp.einsum("bhqd,bhkd->bhqk", q, k) / math.sqrt(float(head_dim))
    causal = jnp.tril(jnp.ones((S, S), dtype=bool))
    s = jnp.where(causal, s, jnp.finfo(jnp.float32).min)
    p = jax.nn.softmax(s, axis=-1)
    a = jnp.einsum("bhqk,bhkd->bhqd", p, v)
    a = a.transpose(0, 2, 1, 3).reshape(B, S, D)
    return a @ w_proj + b_proj


if __name__ == "__main__":
    key = jax.random.PRNGKey(0)
    kx, k1, k2, k3, k4 = jax.random.split(key, 5)
    std = 0.02
    x = jax.random.normal(kx, (BATCH, SEQ, HIDDEN), jnp.float32)
    w_qkv = std * jax.random.normal(k1, (HIDDEN, 3 * HIDDEN), jnp.float32)   # c_attn.weight [nx, nf]
    b_qkv = std * jax.random.normal(k2, (3 * HIDDEN,), jnp.float32)          # c_attn.bias
    w_proj = std * jax.random.normal(k3, (HIDDEN, HIDDEN), jnp.float32)      # c_proj.weight
    b_proj = std * jax.random.normal(k4, (HIDDEN,), jnp.float32)             # c_proj.bias

    out = my_gpt2_attention(x, w_qkv, b_qkv, w_proj, b_proj)
    out = jax.block_until_ready(out)

    ref = my_gpt2_attention_reference(x, w_qkv, b_qkv, w_proj, b_proj)
    # Softmax denominator is now an exact divide; tolerance only covers MXU-vs-XLA f32
    # matmul precision / accumulation-order differences.
    np.testing.assert_allclose(np.asarray(out), np.asarray(ref), rtol=2e-3, atol=2e-4)

    print("KERNEL_OK")
</pallas_src>

<mosaic_0001>
module attributes {stable_mosaic.version = 11 : i64} {
  func.func @_attn_kernel(%arg0: i32, %arg1: memref<8x32xf32, #tpu.memory_space<vmem>>, %arg2: memref<3x4x32x8xf32, #tpu.memory_space<vmem>>, %arg3: memref<3x4x1x8xf32, #tpu.memory_space<vmem>>, %arg4: memref<4x8x32xf32, #tpu.memory_space<vmem>>, %arg5: memref<1x32xf32, #tpu.memory_space<vmem>>, %arg6: memref<8x32xf32, #tpu.memory_space<vmem>>) attributes {dimension_semantics = [#tpu.dimension_semantics<parallel>], iteration_bounds = array<i64: 2>, scalar_prefetch = 0 : i64, scratch_operands = 0 : i64, tpu.core_type = #tpu.core_type<tc>, window_params = [{transform_indices = @transform_0, window_bounds = array<i64: 8, 32>}, {pipeline_mode = #tpu.pipeline_mode<synchronous>, transform_indices = @transform_1, window_bounds = array<i64: 3, 4, 32, 8>}, {pipeline_mode = #tpu.pipeline_mode<synchronous>, transform_indices = @transform_2, window_bounds = array<i64: 3, 4, 1, 8>}, {pipeline_mode = #tpu.pipeline_mode<synchronous>, transform_indices = @transform_3, window_bounds = array<i64: 4, 8, 32>}, {pipeline_mode = #tpu.pipeline_mode<synchronous>, transform_indices = @transform_4, window_bounds = array<i64: 1, 32>}, {transform_indices = @transform_5, window_bounds = array<i64: 8, 32>}]} {
    %c0 = arith.constant 0 : index
    %c0_0 = arith.constant 0 : index
    %0 = vector.load %arg1[%c0, %c0_0] : memref<8x32xf32, #tpu.memory_space<vmem>>, vector<8x32xf32>
    %1 = vector.shape_cast %0 : vector<8x32xf32> to vector<1x8x32xf32>
    %2 = vector.shape_cast %1 : vector<1x8x32xf32> to vector<1x8x32xf32>
    %3 = vector.broadcast %2 : vector<1x8x32xf32> to vector<4x8x32xf32>
    %c0_1 = arith.constant 0 : index
    %c0_2 = arith.constant 0 : index
    %c0_3 = arith.constant 0 : index
    %c0_4 = arith.constant 0 : index
    %4 = vector.load %arg2[%c0_1, %c0_2, %c0_3, %c0_4] : memref<3x4x32x8xf32, #tpu.memory_space<vmem>>, vector<1x4x32x8xf32>
    %5 = vector.shape_cast %4 : vector<1x4x32x8xf32> to vector<4x32x8xf32>
    "tpu.trace_start"() <{level = 10 : i32, message = "hsd,hdk->hsk"}> : () -> ()
    %cst = arith.constant dense<0.000000e+00> : vector<4x8x8xf32>
    %6 = tpu.matmul %3, %5, %cst {dimension_numbers = #tpu.dot_dimension_numbers<[2], [1], [1], [2], [0, 0, 0, 1, 1, 2], [0], [0]>} : vector<4x8x32xf32>, vector<4x32x8xf32>, vector<4x8x8xf32> -> vector<4x8x8xf32>
    "tpu.trace_stop"() : () -> ()
    %c0_5 = arith.constant 0 : index
    %c0_6 = arith.constant 0 : index
    %c0_7 = arith.constant 0 : index
    %c0_8 = arith.constant 0 : index
    %7 = vector.load %arg3[%c0_5, %c0_6, %c0_7, %c0_8] : memref<3x4x1x8xf32, #tpu.memory_space<vmem>>, vector<1x4x1x8xf32>
    %8 = vector.shape_cast %7 : vector<1x4x1x8xf32> to vector<4x1x8xf32>
    %9 = vector.broadcast %8 : vector<4x1x8xf32> to vector<4x8x8xf32>
    %10 = arith.addf %6, %9 : vector<4x8x8xf32>
    %c1 = arith.constant 1 : index
    %c0_9 = arith.constant 0 : index
    %c0_10 = arith.constant 0 : index
    %c0_11 = arith.constant 0 : index
    %11 = vector.load %arg2[%c1, %c0_9, %c0_10, %c0_11] : memref<3x4x32x8xf32, #tpu.memory_space<vmem>>, vector<1x4x32x8xf32>
    %12 = vector.shape_cast %11 : vector<1x4x32x8xf32> to vector<4x32x8xf32>
    "tpu.trace_start"() <{level = 10 : i32, message = "hsd,hdk->hsk"}> : () -> ()
    %cst_12 = arith.constant dense<0.000000e+00> : vector<4x8x8xf32>
    %13 = tpu.matmul %3, %12, %cst_12 {dimension_numbers = #tpu.dot_dimension_numbers<[2], [1], [1], [2], [0, 0, 0, 1, 1, 2], [0], [0]>} : vector<4x8x32xf32>, vector<4x32x8xf32>, vector<4x8x8xf32> -> vector<4x8x8xf32>
    "tpu.trace_stop"() : () -> ()
    %c1_13 = arith.constant 1 : index
    %c0_14 = arith.constant 0 : index
    %c0_15 = arith.constant 0 : index
    %c0_16 = arith.constant 0 : index
    %14 = vector.load %arg3[%c1_13, %c0_14, %c0_15, %c0_16] : memref<3x4x1x8xf32, #tpu.memory_space<vmem>>, vector<1x4x1x8xf32>
    %15 = vector.shape_cast %14 : vector<1x4x1x8xf32> to vector<4x1x8xf32>
    %16 = vector.broadcast %15 : vector<4x1x8xf32> to vector<4x8x8xf32>
    %17 = arith.addf %13, %16 : vector<4x8x8xf32>
    %c2 = arith.constant 2 : index
    %c0_17 = arith.constant 0 : index
    %c0_18 = arith.constant 0 : index
    %c0_19 = arith.constant 0 : index
    %18 = vector.load %arg2[%c2, %c0_17, %c0_18, %c0_19] : memref<3x4x32x8xf32, #tpu.memory_space<vmem>>, vector<1x4x32x8xf32>
    %19 = vector.shape_cast %18 : vector<1x4x32x8xf32> to vector<4x32x8xf32>
    "tpu.trace_start"() <{level = 10 : i32, message = "hsd,hdk->hsk"}> : () -> ()
    %cst_20 = arith.constant dense<0.000000e+00> : vector<4x8x8xf32>
    %20 = tpu.matmul %3, %19, %cst_20 {dimension_numbers = #tpu.dot_dimension_numbers<[2], [1], [1], [2], [0, 0, 0, 1, 1, 2], [0], [0]>} : vector<4x8x32xf32>, vector<4x32x8xf32>, vector<4x8x8xf32> -> vector<4x8x8xf32>
    "tpu.trace_stop"() : () -> ()
    %c2_21 = arith.constant 2 : index
    %c0_22 = arith.constant 0 : index
    %c0_23 = arith.constant 0 : index
    %c0_24 = arith.constant 0 : index
    %21 = vector.load %arg3[%c2_21, %c0_22, %c0_23, %c0_24] : memref<3x4x1x8xf32, #tpu.memory_space<vmem>>, vector<1x4x1x8xf32>
    %22 = vector.shape_cast %21 : vector<1x4x1x8xf32> to vector<4x1x8xf32>
    %23 = vector.broadcast %22 : vector<4x1x8xf32> to vector<4x8x8xf32>
    %24 = arith.addf %20, %23 : vector<4x8x8xf32>
    "tpu.trace_start"() <{level = 10 : i32, message = "hqd,hkd->hqk"}> : () -> ()
    %cst_25 = arith.constant dense<0.000000e+00> : vector<4x8x8xf32>
    %25 = tpu.matmul %10, %17, %cst_25 {dimension_numbers = #tpu.dot_dimension_numbers<[2], [2], [1], [1], [0, 0, 0, 1, 1, 1], [0], [0]>} : vector<4x8x8xf32>, vector<4x8x8xf32>, vector<4x8x8xf32> -> vector<4x8x8xf32>
    "tpu.trace_stop"() : () -> ()
    %cst_26 = arith.constant 0.353553385 : f32
    %26 = vector.broadcast %cst_26 : f32 to vector<4x8x8xf32>
    %27 = arith.mulf %25, %26 : vector<4x8x8xf32>
    %28 = tpu.iota {dimensions = array<i32: 0>} : vector<8x8xi32>
    %29 = tpu.iota {dimensions = array<i32: 1>} : vector<8x8xi32>
    %30 = arith.cmpi sge, %28, %29 : vector<8x8xi32>
    %31 = vector.shape_cast %30 : vector<8x8xi1> to vector<1x8x8xi1>
    %cst_27 = arith.constant -3.40282347E+38 : f32
    %32 = vector.shape_cast %31 : vector<1x8x8xi1> to vector<1x8x8xi1>
    %33 = vector.broadcast %32 : vector<1x8x8xi1> to vector<4x8x8xi1>
    %34 = vector.broadcast %cst_27 : f32 to vector<4x8x8xf32>
    %35 = arith.select %33, %27, %34 : vector<4x8x8xi1>, vector<4x8x8xf32>
    %cst_28 = arith.constant dense<0xFF800000> : vector<4x8xf32>
    %36 = vector.multi_reduction <maximumf>, %35, %cst_28 [2] : vector<4x8x8xf32> to vector<4x8xf32>
    %37 = vector.shape_cast %36 : vector<4x8xf32> to vector<4x8x1xf32>
    %38 = vector.broadcast %37 : vector<4x8x1xf32> to vector<4x8x8xf32>
    %39 = arith.subf %35, %38 : vector<4x8x8xf32>
    %40 = math.exp %39 : vector<4x8x8xf32>
    %cst_29 = arith.constant dense<0.000000e+00> : vector<4x8xf32>
    %41 = vector.multi_reduction <add>, %40, %cst_29 [2] : vector<4x8x8xf32> to vector<4x8xf32>
    %42 = vector.shape_cast %41 : vector<4x8xf32> to vector<4x8x1xf32>
    %43 = vector.broadcast %42 : vector<4x8x1xf32> to vector<4x8x8xf32>
    %44 = arith.divf %40, %43 : vector<4x8x8xf32>
    "tpu.trace_start"() <{level = 10 : i32, message = "hqk,hkd->hqd"}> : () -> ()
    %cst_30 = arith.constant dense<0.000000e+00> : vector<4x8x8xf32>
    %45 = tpu.matmul %44, %24, %cst_30 {dimension_numbers = #tpu.dot_dimension_numbers<[2], [1], [1], [2], [0, 0, 0, 1, 1, 2], [0], [0]>} : vector<4x8x8xf32>, vector<4x8x8xf32>, vector<4x8x8xf32> -> vector<4x8x8xf32>
    "tpu.trace_stop"() : () -> ()
    %c0_31 = arith.constant 0 : index
    %c0_32 = arith.constant 0 : index
    %c0_33 = arith.constant 0 : index
    %46 = vector.load %arg4[%c0_31, %c0_32, %c0_33] : memref<4x8x32xf32, #tpu.memory_space<vmem>>, vector<4x8x32xf32>
    "tpu.trace_start"() <{level = 10 : i32, message = "hqd,hdn->hqn"}> : () -> ()
    %cst_34 = arith.constant dense<0.000000e+00> : vector<4x8x32xf32>
    %47 = tpu.matmul %45, %46, %cst_34 {dimension_numbers = #tpu.dot_dimension_numbers<[2], [1], [1], [2], [0, 0, 0, 1, 1, 2], [0], [0]>} : vector<4x8x8xf32>, vector<4x8x32xf32>, vector<4x8x32xf32> -> vector<4x8x32xf32>
    "tpu.trace_stop"() : () -> ()
    %cst_35 = arith.constant dense<0.000000e+00> : vector<8x32xf32>
    %48 = vector.multi_reduction <add>, %47, %cst_35 [0] : vector<4x8x32xf32> to vector<8x32xf32>
    %c0_36 = arith.constant 0 : index
    %c0_37 = arith.constant 0 : index
    %49 = vector.load %arg5[%c0_36, %c0_37] : memref<1x32xf32, #tpu.memory_space<vmem>>, vector<1x32xf32>
    %50 = vector.broadcast %49 : vector<1x32xf32> to vector<8x32xf32>
    %51 = arith.addf %48, %50 : vector<8x32xf32>
    %c0_38 = arith.constant 0 : index
    %c0_39 = arith.constant 0 : index
    %52 = vector.load %arg6[%c0_38, %c0_39] : memref<8x32xf32, #tpu.memory_space<vmem>>, vector<8x32xf32>
    tpu.vector_store %arg6[%c0_38, %c0_39], %51 {strides = array<i32>} : memref<8x32xf32, #tpu.memory_space<vmem>>, vector<8x32xf32>,
    return
  }
  func.func @transform_0(%arg0: i32) -> (i32, i32) {
    %c0_i32 = arith.constant 0 : i32
    %c0_i32_0 = arith.constant 0 : i32
    return %arg0, %c0_i32 : i32, i32
  }
  func.func @transform_1(%arg0: i32) -> (i32, i32, i32, i32) {
    %c0_i32 = arith.constant 0 : i32
    %c0_i32_0 = arith.constant 0 : i32
    %c0_i32_1 = arith.constant 0 : i32
    %c0_i32_2 = arith.constant 0 : i32
    %c0_i32_3 = arith.constant 0 : i32
    return %c0_i32, %c0_i32_0, %c0_i32_1, %c0_i32_2 : i32, i32, i32, i32
  }
  func.func @transform_2(%arg0: i32) -> (i32, i32, i32, i32) {
    %c0_i32 = arith.constant 0 : i32
    %c0_i32_0 = arith.constant 0 : i32
    %c0_i32_1 = arith.constant 0 : i32
    %c0_i32_2 = arith.constant 0 : i32
    %c0_i32_3 = arith.constant 0 : i32
    return %c0_i32, %c0_i32_0, %c0_i32_1, %c0_i32_2 : i32, i32, i32, i32
  }
  func.func @transform_3(%arg0: i32) -> (i32, i32, i32) {
    %c0_i32 = arith.constant 0 : i32
    %c0_i32_0 = arith.constant 0 : i32
    %c0_i32_1 = arith.constant 0 : i32
    %c0_i32_2 = arith.constant 0 : i32
    return %c0_i32, %c0_i32_0, %c0_i32_1 : i32, i32, i32
  }
  func.func @transform_4(%arg0: i32) -> (i32, i32) {
    %c0_i32 = arith.constant 0 : i32
    %c0_i32_0 = arith.constant 0 : i32
    %c0_i32_1 = arith.constant 0 : i32
    return %c0_i32, %c0_i32_0 : i32, i32
  }
  func.func @transform_5(%arg0: i32) -> (i32, i32) {
    %c0_i32 = arith.constant 0 : i32
    %c0_i32_0 = arith.constant 0 : i32
    return %arg0, %c0_i32 : i32, i32
  }
}

</mosaic_0001>

<llo_original>
// kernel: tpu_custom_call.1
$region0: #{tpu_custom_call.1}
  #allocation0 [shape = 'u32[]', space=smem, size = 0x4, offset = 0x4, fixed_abs, tag = 'smem constant byte address 0x4 - core index']
  #allocation1 [shape = 'u32[144,128]{1,0:T(1,128)}', space=vmem, size = 0x12000, scoped, tag = 'internal scratch']
  %s0 = inlined_call_operand.vmem [shape: f32[16,32], index: 0, kind: input, shape index: {}]
  %s1 = inlined_call_operand.vmem [shape: f32[3,4,32,8], index: 1, kind: input, shape index: {}]
  %s2 = inlined_call_operand.vmem [shape: f32[3,4,1,8], index: 2, kind: input, shape index: {}]
  %s3 = inlined_call_operand.vmem [shape: f32[4,8,32], index: 3, kind: input, shape index: {}]
  %s4 = inlined_call_operand.vmem [shape: f32[1,32], index: 4, kind: input, shape index: {}]
  %s5 = inlined_call_operand.hbm [shape: f32[16,32], index: 5, kind: output, shape index: {}]
  %s6 = sld [smem:[#allocation0]]
  $region53: #{tpu_custom_call.1} parent=0
    _
  %s8 = ssub.s32 1, %s6
  %s9 = scalar_select 0, %s8, %s6
  $region1: #{tpu_custom_call.1} parent=0
    #allocation2 [shape = 'u8[8192]{0}', space=vmem, size = 0x2000, scoped, tag = 'output window, operand 0']
    #allocation3 [shape = 's32[2]{0}', space=sflag, size = 0x8, scoped, tag = 'scoped memory for tpu_custom_call.1']
    %10 = vsyncpa [#allocation3], 0
    %s11 = scalar_lea.sflag [#allocation3], 1
    %12 = vsyncpa %s11, 0
    loop: start=0, step=1, limit=4
    $region2: #{tpu_custom_call.1} parent=1 // loop_pre_header
      _
    $region3: #{tpu_custom_call.1} parent=1 // loop_header
      %s14 = sphi 0, %s18
      %p15 = scmp.ge.s32.totalorder %s14, 4
      %s24 = sphi 0, %s26
      %s27 = sphi 0, %s24
      %s28 = sphi 0, %s27
      %s44 = sphi 0, %s28
      %s48 = sphi 0, %s48
      %s50 = sphi 0, %s48
      %s51 = sphi 0, %s50
      %s65 = sphi 0, %s51
      %s69 = sphi 0, %s69
      %s71 = sphi 0, %s69
      %s72 = sphi 0, %s71
      %s86 = sphi 0, %s72
      %s90 = sphi 0, %s90
      %s92 = sphi 0, %s90
      %s93 = sphi 0, %s92
      %s107 = sphi 0, %s93
      %s111 = sphi 0, %s111
      %s113 = sphi 0, %s111
      %s114 = sphi 0, %s113
      %s128 = sphi 0, %s114
      %s134 = sphi 0, %s136
      %s137 = sphi 0, %s134
      %s138 = sphi 0, %s137
      %s154 = sphi 0, %s138
    $region4: #{tpu_custom_call.1} parent=1 // loop_header_branch
      %17 = sbr.rel (%p15) target = $region8
    $region5: #{tpu_custom_call.1} parent=1 // loop_body
      %s19 = ssub.s32 %s14, 1
      %s20 = ssub.s32 %s14, 2
      %s21 = sadd.s32 %s14, 1
      %s22 = ssub.s32 %s14, %s21
      %p23 = scmp.eq.s32.totalorder %s22, 0
      %s25 = sadd.s32 %s24, 1
      %s26 = scalar_select %p23, %s24, %s25
      %p29 = pneg %p23
      %p30 = scmp.eq.s32.totalorder %s14, 1
      %p31 = por %p29, %p30
      %p32 = scmp.ne.s32.totalorder %s24, %s27
      %p33 = scmp.eq.s32.totalorder %s14, 0
      %p34 = por %p32, %p33
      %p35 = scmp.ne.s32.totalorder %s24, %s27
      %p36 = scmp.eq.s32.totalorder %s19, 1
      %p37 = por %p35, %p36
      %p38 = scmp.ne.s32.totalorder %s27, %s28
      %p39 = scmp.eq.s32.totalorder %s19, 0
      %p40 = por %p38, %p39
      %p41 = scmp.ne.s32.totalorder %s27, %s28
      %p42 = scmp.eq.s32.totalorder %s20, 1
      %p43 = por %p41, %p42
      %p45 = scmp.ne.s32.totalorder %s28, %s44
      %p46 = scmp.eq.s32.totalorder %s20, 0
      %p47 = por %p45, %p46
      %s49 = sadd.s32 %s48, 1
      %p52 = scmp.eq.s32.totalorder %s14, 1
      %p53 = scmp.ne.s32.totalorder %s48, %s50
      %p54 = scmp.eq.s32.totalorder %s14, 0
      %p55 = por %p53, %p54
      %p56 = scmp.ne.s32.totalorder %s48, %s50
      %p57 = scmp.eq.s32.totalorder %s19, 1
      %p58 = por %p56, %p57
      %p59 = scmp.ne.s32.totalorder %s50, %s51
      %p60 = scmp.eq.s32.totalorder %s19, 0
      %p61 = por %p59, %p60
      %p62 = scmp.ne.s32.totalorder %s50, %s51
      %p63 = scmp.eq.s32.totalorder %s20, 1
      %p64 = por %p62, %p63
      %p66 = scmp.ne.s32.totalorder %s51, %s65
      %p67 = scmp.eq.s32.totalorder %s20, 0
      %p68 = por %p66, %p67
      %s70 = sadd.s32 %s69, 1
      %p73 = scmp.eq.s32.totalorder %s14, 1
      %p74 = scmp.ne.s32.totalorder %s69, %s71
      %p75 = scmp.eq.s32.totalorder %s14, 0
      %p76 = por %p74, %p75
      %p77 = scmp.ne.s32.totalorder %s69, %s71
      %p78 = scmp.eq.s32.totalorder %s19, 1
      %p79 = por %p77, %p78
      %p80 = scmp.ne.s32.totalorder %s71, %s72
      %p81 = scmp.eq.s32.totalorder %s19, 0
      %p82 = por %p80, %p81
      %p83 = scmp.ne.s32.totalorder %s71, %s72
      %p84 = scmp.eq.s32.totalorder %s20, 1
      %p85 = por %p83, %p84
      %p87 = scmp.ne.s32.totalorder %s72, %s86
      %p88 = scmp.eq.s32.totalorder %s20, 0
      %p89 = por %p87, %p88
      %s91 = sadd.s32 %s90, 1
      %p94 = scmp.eq.s32.totalorder %s14, 1
      %p95 = scmp.ne.s32.totalorder %s90, %s92
      %p96 = scmp.eq.s32.totalorder %s14, 0
      %p97 = por %p95, %p96
      %p98 = scmp.ne.s32.totalorder %s90, %s92
      %p99 = scmp.eq.s32.totalorder %s19, 1
      %p100 = por %p98, %p99
      %p101 = scmp.ne.s32.totalorder %s92, %s93
      %p102 = scmp.eq.s32.totalorder %s19, 0
      %p103 = por %p101, %p102
      %p104 = scmp.ne.s32.totalorder %s92, %s93
      %p105 = scmp.eq.s32.totalorder %s20, 1
      %p106 = por %p104, %p105
      %p108 = scmp.ne.s32.totalorder %s93, %s107
      %p109 = scmp.eq.s32.totalorder %s20, 0
      %p110 = por %p108, %p109
      %s112 = sadd.s32 %s111, 1
      %p115 = scmp.eq.s32.totalorder %s14, 1
      %p116 = scmp.ne.s32.totalorder %s111, %s113
      %p117 = scmp.eq.s32.totalorder %s14, 0
      %p118 = por %p116, %p117
      %p119 = scmp.ne.s32.totalorder %s111, %s113
      %p120 = scmp.eq.s32.totalorder %s19, 1
      %p121 = por %p119, %p120
      %p122 = scmp.ne.s32.totalorder %s113, %s114
      %p123 = scmp.eq.s32.totalorder %s19, 0
      %p124 = por %p122, %p123
      %p125 = scmp.ne.s32.totalorder %s113, %s114
      %p126 = scmp.eq.s32.totalorder %s20, 1
      %p127 = por %p125, %p126
      %p129 = scmp.ne.s32.totalorder %s114, %s128
      %p130 = scmp.eq.s32.totalorder %s20, 0
      %p131 = por %p129, %p130
      %s132 = ssub.s32 %s14, %s21
      %p133 = scmp.eq.s32.totalorder %s132, 0
      %s135 = sadd.s32 %s134, 1
      %s136 = scalar_select %p133, %s134, %s135
      %p139 = pneg %p133
      %p140 = scmp.eq.s32.totalorder %s14, 1
      %p141 = por %p139, %p140
      %p142 = scmp.ne.s32.totalorder %s134, %s137
      %p143 = scmp.eq.s32.totalorder %s14, 0
      %p144 = por %p142, %p143
      %p145 = scmp.ne.s32.totalorder %s134, %s137
      %p146 = scmp.eq.s32.totalorder %s19, 1
      %p147 = por %p145, %p146
      %p148 = scmp.ne.s32.totalorder %s137, %s138
      %p149 = scmp.eq.s32.totalorder %s19, 0
      %p150 = por %p148, %p149
      %p151 = scmp.ne.s32.totalorder %s137, %s138
      %p152 = scmp.eq.s32.totalorder %s20, 1
      %p153 = por %p151, %p152
      %p155 = scmp.ne.s32.totalorder %s138, %s154
      %p156 = scmp.eq.s32.totalorder %s20, 0
      %p157 = por %p155, %p156
      %p158 = scmp.le.s32.totalorder 1, %s14
      %p159 = scmp.lt.s32.totalorder %s14, 3
      %p160 = pnand %p158, %p159
      %p161 = pneg %p160
      // Predicated region
      $region9: #{tpu_custom_call.1} parent=5 // pred_check
        _
      $region10: #{tpu_custom_call.1} parent=5 // pred_check_branch
        %163 = sbr.rel (%p160) target = $region12
      $region11: #{tpu_custom_call.1} parent=5 // pred_region
        %s164 = ssub.s32 %s14, 1
        // Predicated region
        $region13: #{tpu_custom_call.1} parent=11 // pred_check
          %p165 = pneg %p61
        $region14: #{tpu_custom_call.1} parent=11 // pred_check_branch
          %167 = sbr.rel (%p165) target = $region16
        $region15: #{tpu_custom_call.1} parent=11 // pred_region
          _
        $region16: #{tpu_custom_call.1} parent=11 // pred_fallthru
          _
        // Predicated region
        $region17: #{tpu_custom_call.1} parent=11 // pred_check
          %p168 = pneg %p82
        $region18: #{tpu_custom_call.1} parent=11 // pred_check_branch
          %170 = sbr.rel (%p168) target = $region20
        $region19: #{tpu_custom_call.1} parent=11 // pred_region
          _
        $region20: #{tpu_custom_call.1} parent=11 // pred_fallthru
          _
        // Predicated region
        $region21: #{tpu_custom_call.1} parent=11 // pred_check
          %p171 = pneg %p103
        $region22: #{tpu_custom_call.1} parent=11 // pred_check_branch
          %173 = sbr.rel (%p171) target = $region24
        $region23: #{tpu_custom_call.1} parent=11 // pred_region
          _
        $region24: #{tpu_custom_call.1} parent=11 // pred_fallthru
          _
        // Predicated region
        $region25: #{tpu_custom_call.1} parent=11 // pred_check
          %p174 = pneg %p124
        $region26: #{tpu_custom_call.1} parent=11 // pred_check_branch
          %176 = sbr.rel (%p174) target = $region28
        $region27: #{tpu_custom_call.1} parent=11 // pred_region
          _
        $region28: #{tpu_custom_call.1} parent=11 // pred_fallthru
          _
      $region12: #{tpu_custom_call.1} parent=5 // pred_fallthru
        _
      %p177 = scmp.lt.s32.totalorder %s14, 2
      // Predicated region
      $region29: #{tpu_custom_call.1} parent=5 // pred_check
        %p178 = pneg %p177
      $region30: #{tpu_custom_call.1} parent=5 // pred_check_branch
        %180 = sbr.rel (%p178) target = $region32
      $region31: #{tpu_custom_call.1} parent=5 // pred_region
        // Predicated region
        $region33: #{tpu_custom_call.1} parent=31 // pred_check
          %p181 = pneg %p34
        $region34: #{tpu_custom_call.1} parent=31 // pred_check_branch
          %183 = sbr.rel (%p181) target = $region36
        $region35: #{tpu_custom_call.1} parent=31 // pred_region
          %p184 = scmp.lt.s32.totalorder %s14, 1
          %s185 = scalar_select %p184, %s14, 1
          %s186 = smul.addr %s185, 8
          %s187 = scalar_lea.vmem %s0, %s186
        $region36: #{tpu_custom_call.1} parent=31 // pred_fallthru
          _
      $region32: #{tpu_custom_call.1} parent=5 // pred_fallthru
        _
      %p188 = scmp.le.s32.totalorder 1, %s14
      %p189 = scmp.lt.s32.totalorder %s14, 3
      %p190 = pnand %p188, %p189
      %p191 = pneg %p190
      // Predicated region
      $region37: #{tpu_custom_call.1} parent=5 // pred_check
        _
      $region38: #{tpu_custom_call.1} parent=5 // pred_check_branch
        %193 = sbr.rel (%p190) target = $region40
      $region39: #{tpu_custom_call.1} parent=5 // pred_region
        %s194 = ssub.s32 %s14, 1
        %p195 = scmp.lt.s32.totalorder %s19, 1
        %s196 = scalar_select %p195, %s19, 1
        %s197 = smul.addr %s196, 8
        %s198 = scalar_lea.vmem %s0, %s197
        %p199 = pneg %p40
        %p200 = pneg %p37
        %p201 = pneg %p61
        %p202 = pneg %p58
        %p203 = pneg %p82
        %p204 = pneg %p79
        %p205 = pneg %p103
        %p206 = pneg %p100
        %p207 = pneg %p124
        %p208 = pneg %p121
        %p209 = pneg %p150
        %p210 = pneg %p147
        %s211 = sand.u32 %s137, 1
        %s212 = scalar_lea.sflag [#allocation3], %s211
        %s213 = sand.u32 %s137, 1
        %s214 = smul.addr %s213, 8
        %s215 = scalar_lea.vmem [#allocation2], %s214
        %p216 = scmp.lt.s32.totalorder %s19, 1
        %s217 = scalar_select %p216, %s19, 1
        %s218 = smul.addr %s217, 8
        %s219 = scalar_lea.vmem %s0, %s218
        %v220 = vld [vmem:[%s219] sm:$0xff]
        %v221 = vld [vmem:[%s1] sm:$0xff]
        %v222 = vld [vmem:[%s1 + $0x8] sm:$0xff]
        %v223 = vld [vmem:[%s1 + $0x10] sm:$0xff]
        %v224 = vld [vmem:[%s1 + $0x18] sm:$0xff]
        %v225 = vld [vmem:[%s1 + $0x20] sm:$0xff]
        %v226 = vld [vmem:[%s1 + $0x28] sm:$0xff]
        %v227 = vld [vmem:[%s1 + $0x30] sm:$0xff]
        %v228 = vld [vmem:[%s1 + $0x38] sm:$0xff]
        %v229 = vld [vmem:[%s1 + $0x40] sm:$0xff]
        %v230 = vld [vmem:[%s1 + $0x48] sm:$0xff]
        %v231 = vld [vmem:[%s1 + $0x50] sm:$0xff]
        %v232 = vld [vmem:[%s1 + $0x58] sm:$0xff]
        %v233 = vld [vmem:[%s1 + $0x60] sm:$0xff]
        %v234 = vld [vmem:[%s1 + $0x68] sm:$0xff]
        %v235 = vld [vmem:[%s1 + $0x70] sm:$0xff]
        %v236 = vld [vmem:[%s1 + $0x78] sm:$0xff]
        %v237 = vld [vmem:[%s2] sm:$0x1]
        %v238 = vld [vmem:[%s2 + $0x1] sm:$0x1]
        %v239 = vld [vmem:[%s2 + $0x2] sm:$0x1]
        %v240 = vld [vmem:[%s2 + $0x3] sm:$0x1]
        %v245 = vlaneseq
        %v246 = vshrl.u32 %v245, 7
        %v247 = vsub.s32 0, %v246
        %v248 = vrot.slane %v237, %v247
        %v249 = vlaneseq
        %v250 = vshrl.u32 %v249, 7
        %v251 = vsub.s32 0, %v250
        %v252 = vrot.slane %v238, %v251
        %v253 = vlaneseq
        %v254 = vshrl.u32 %v253, 7
        %v255 = vsub.s32 0, %v254
        %v256 = vrot.slane %v239, %v255
        %v257 = vlaneseq
        %v258 = vshrl.u32 %v257, 7
        %v259 = vsub.s32 0, %v258
        %v260 = vrot.slane %v240, %v259
        %vm265 = vcmask 261120
        %v267 = vsel %vm265, %v220, 0
        %269 = vmatprep.subr.mxu0 0.0
        %270 = vmatpush1.msra.mxu0 %v221
        %271 = vmatprep.subr.mxu0 0.0
        %272 = vmatpush1.msra.mxu0 %v222
        %273 = vmatprep.subr.mxu0 0.0
        %274 = vmatpush1.msra.mxu0 %v223
        %275 = vmatprep.subr.mxu0 0.0
        %276 = vmatpush1.msra.mxu0 %v224
        %277 = vmatprep.subr.mxu0 0.0
        %278 = vmatpush1.msra.mxu0 0.0
        %279 = vmatprep.subr.mxu0 0.0
        %280 = vmatpush1.msra.mxu0 0.0
        %281 = vmatprep.subr.mxu0 0.0
        %282 = vmatpush1.msra.mxu0 0.0
        %283 = vmatprep.subr.mxu0 0.0
        %284 = vmatpush1.msra.mxu0 0.0
        %285 = vmatprep.subr.mxu0 0.0
        %286 = vmatpush1.msra.mxu0 0.0
        %287 = vmatprep.subr.mxu0 0.0
        %288 = vmatpush1.msra.mxu0 0.0
        %289 = vmatprep.subr.mxu0 0.0
        %290 = vmatpush1.msra.mxu0 0.0
        %291 = vmatprep.subr.mxu0 0.0
        %292 = vmatpush1.msra.mxu0 0.0
        %293 = vmatprep.subr.mxu0 0.0
        %294 = vmatpush1.msra.mxu0 0.0
        %295 = vmatprep.subr.mxu0 0.0
        %296 = vmatpush1.msra.mxu0 0.0
        %297 = vmatprep.subr.mxu0 0.0
        %298 = vmatpush1.msra.mxu0 0.0
        %299 = vmatprep.subr.mxu0 0.0
        %300 = vmatpush1.msra.mxu0 0.0
        %301 = vmatprep.subr.mxu0 0.0
        %302 = vmatpush1.msra.mxu0 0.0
        %303 = vmatprep.subr.mxu0 0.0
        %304 = vmatpush1.msra.mxu0 0.0
        %305 = vmatprep.subr.mxu0 0.0
        %306 = vmatpush1.msra.mxu0 0.0
        %307 = vmatprep.subr.mxu0 0.0
        %308 = vmatpush1.msra.mxu0 0.0
        %309 = vmatprep.subr.mxu0 0.0
        %310 = vmatpush1.msra.mxu0 0.0
        %311 = vmatprep.subr.mxu0 0.0
        %312 = vmatpush1.msra.mxu0 0.0
        %313 = vmatprep.subr.mxu0 0.0
        %314 = vmatpush1.msra.mxu0 0.0
        %315 = vmatprep.subr.mxu0 0.0
        %316 = vmatpush1.msra.mxu0 0.0
        %317 = vmatprep.subr.mxu0 0.0
        %318 = vmatpush1.msra.mxu0 0.0
        %319 = vmatprep.subr.mxu0 0.0
        %320 = vmatpush1.msra.mxu0 0.0
        %321 = vmatprep.subr.mxu0 0.0
        %322 = vmatpush1.msra.mxu0 0.0
        %323 = vmatprep.subr.mxu0 0.0
        %324 = vmatpush1.msra.mxu0 0.0
        %325 = vmatprep.subr.mxu0 0.0
        %326 = vmatpush1.msra.mxu0 0.0
        %327 = vmatprep.subr.mxu0 0.0
        %328 = vmatpush1.msra.mxu0 0.0
        %329 = vmatprep.subr.mxu0 0.0
        %330 = vmatpush1.msra.mxu0 0.0
        %331 = vmatprep.subr.mxu0 0.0
        %332 = vmatpush1.msra.mxu0 0.0
        %333 = vmatprep.mubr.f32.mxu0 0.0
        %334 = vmatmul.mubr.f32.gmra.mrb[0].mxu0 %v267
        %v335 = vpop.f32.mrb[0].mxu0
        %v336 = vadd.f32 %v248, %v335
        %v337 = vpop.f32.mrb[0].mxu0
        %338 = vdwg.mxu0
        %339 = vmatprep.subr.mxu0 0.0
        %340 = vmatpush1.msra.mxu0 %v225
        %341 = vmatprep.subr.mxu0 0.0
        %342 = vmatpush1.msra.mxu0 %v226
        %343 = vmatprep.subr.mxu0 0.0
        %344 = vmatpush1.msra.mxu0 %v227
        %345 = vmatprep.subr.mxu0 0.0
        %346 = vmatpush1.msra.mxu0 %v228
        %347 = vmatprep.subr.mxu0 0.0
        %348 = vmatpush1.msra.mxu0 0.0
        %349 = vmatprep.subr.mxu0 0.0
        %350 = vmatpush1.msra.mxu0 0.0
        %351 = vmatprep.subr.mxu0 0.0
        %352 = vmatpush1.msra.mxu0 0.0
        %353 = vmatprep.subr.mxu0 0.0
        %354 = vmatpush1.msra.mxu0 0.0
        %355 = vmatprep.subr.mxu0 0.0
        %356 = vmatpush1.msra.mxu0 0.0
        %357 = vmatprep.subr.mxu0 0.0
        %358 = vmatpush1.msra.mxu0 0.0
        %359 = vmatprep.subr.mxu0 0.0
        %360 = vmatpush1.msra.mxu0 0.0
        %361 = vmatprep.subr.mxu0 0.0
        %362 = vmatpush1.msra.mxu0 0.0
        %363 = vmatprep.subr.mxu0 0.0
        %364 = vmatpush1.msra.mxu0 0.0
        %365 = vmatprep.subr.mxu0 0.0
        %366 = vmatpush1.msra.mxu0 0.0
        %367 = vmatprep.subr.mxu0 0.0
        %368 = vmatpush1.msra.mxu0 0.0
        %369 = vmatprep.subr.mxu0 0.0
        %370 = vmatpush1.msra.mxu0 0.0
        %371 = vmatprep.subr.mxu0 0.0
        %372 = vmatpush1.msra.mxu0 0.0
        %373 = vmatprep.subr.mxu0 0.0
        %374 = vmatpush1.msra.mxu0 0.0
        %375 = vmatprep.subr.mxu0 0.0
        %376 = vmatpush1.msra.mxu0 0.0
        %377 = vmatprep.subr.mxu0 0.0
        %378 = vmatpush1.msra.mxu0 0.0
        %379 = vmatprep.subr.mxu0 0.0
        %380 = vmatpush1.msra.mxu0 0.0
        %381 = vmatprep.subr.mxu0 0.0
        %382 = vmatpush1.msra.mxu0 0.0
        %383 = vmatprep.subr.mxu0 0.0
        %384 = vmatpush1.msra.mxu0 0.0
        %385 = vmatprep.subr.mxu0 0.0
        %386 = vmatpush1.msra.mxu0 0.0
        %387 = vmatprep.subr.mxu0 0.0
        %388 = vmatpush1.msra.mxu0 0.0
        %389 = vmatprep.subr.mxu0 0.0
        %390 = vmatpush1.msra.mxu0 0.0
        %391 = vmatprep.subr.mxu0 0.0
        %392 = vmatpush1.msra.mxu0 0.0
        %393 = vmatprep.subr.mxu0 0.0
        %394 = vmatpush1.msra.mxu0 0.0
        %395 = vmatprep.subr.mxu0 0.0
        %396 = vmatpush1.msra.mxu0 0.0
        %397 = vmatprep.subr.mxu0 0.0
        %398 = vmatpush1.msra.mxu0 0.0
        %399 = vmatprep.subr.mxu0 0.0
        %400 = vmatpush1.msra.mxu0 0.0
        %401 = vmatprep.subr.mxu0 0.0
        %402 = vmatpush1.msra.mxu0 0.0
        %403 = vmatprep.mubr.f32.mxu0 0.0
        %404 = vmatmul.mubr.f32.gmra.mrb[0].mxu0 %v267
        %v405 = vpop.f32.mrb[0].mxu0
        %v406 = vadd.f32 %v252, %v405
        %v407 = vpop.f32.mrb[0].mxu0
        %408 = vdwg.mxu0
        %409 = vmatprep.subr.mxu0 0.0
        %410 = vmatpush1.msra.mxu0 %v229
        %411 = vmatprep.subr.mxu0 0.0
        %412 = vmatpush1.msra.mxu0 %v230
        %413 = vmatprep.subr.mxu0 0.0
        %414 = vmatpush1.msra.mxu0 %v231
        %415 = vmatprep.subr.mxu0 0.0
        %416 = vmatpush1.msra.mxu0 %v232
        %417 = vmatprep.subr.mxu0 0.0
        %418 = vmatpush1.msra.mxu0 0.0
        %419 = vmatprep.subr.mxu0 0.0
        %420 = vmatpush1.msra.mxu0 0.0
        %421 = vmatprep.subr.mxu0 0.0
        %422 = vmatpush1.msra.mxu0 0.0
        %423 = vmatprep.subr.mxu0 0.0
        %424 = vmatpush1.msra.mxu0 0.0
        %425 = vmatprep.subr.mxu0 0.0
        %426 = vmatpush1.msra.mxu0 0.0
        %427 = vmatprep.subr.mxu0 0.0
        %428 = vmatpush1.msra.mxu0 0.0
        %429 = vmatprep.subr.mxu0 0.0
        %430 = vmatpush1.msra.mxu0 0.0
        %431 = vmatprep.subr.mxu0 0.0
        %432 = vmatpush1.msra.mxu0 0.0
        %433 = vmatprep.subr.mxu0 0.0
        %434 = vmatpush1.msra.mxu0 0.0
        %435 = vmatprep.subr.mxu0 0.0
        %436 = vmatpush1.msra.mxu0 0.0
        %437 = vmatprep.subr.mxu0 0.0
        %438 = vmatpush1.msra.mxu0 0.0
        %439 = vmatprep.subr.mxu0 0.0
        %440 = vmatpush1.msra.mxu0 0.0
        %441 = vmatprep.subr.mxu0 0.0
        %442 = vmatpush1.msra.mxu0 0.0
        %443 = vmatprep.subr.mxu0 0.0
        %444 = vmatpush1.msra.mxu0 0.0
        %445 = vmatprep.subr.mxu0 0.0
        %446 = vmatpush1.msra.mxu0 0.0
        %447 = vmatprep.subr.mxu0 0.0
        %448 = vmatpush1.msra.mxu0 0.0
        %449 = vmatprep.subr.mxu0 0.0
        %450 = vmatpush1.msra.mxu0 0.0
        %451 = vmatprep.subr.mxu0 0.0
        %452 = vmatpush1.msra.mxu0 0.0
        %453 = vmatprep.subr.mxu0 0.0
        %454 = vmatpush1.msra.mxu0 0.0
        %455 = vmatprep.subr.mxu0 0.0
        %456 = vmatpush1.msra.mxu0 0.0
        %457 = vmatprep.subr.mxu0 0.0
        %458 = vmatpush1.msra.mxu0 0.0
        %459 = vmatprep.subr.mxu0 0.0
        %460 = vmatpush1.msra.mxu0 0.0
        %461 = vmatprep.subr.mxu0 0.0
        %462 = vmatpush1.msra.mxu0 0.0
        %463 = vmatprep.subr.mxu0 0.0
        %464 = vmatpush1.msra.mxu0 0.0
        %465 = vmatprep.subr.mxu0 0.0
        %466 = vmatpush1.msra.mxu0 0.0
        %467 = vmatprep.subr.mxu0 0.0
        %468 = vmatpush1.msra.mxu0 0.0
        %469 = vmatprep.subr.mxu0 0.0
        %470 = vmatpush1.msra.mxu0 0.0
        %471 = vmatprep.subr.mxu0 0.0
        %472 = vmatpush1.msra.mxu0 0.0
        %473 = vmatprep.mubr.f32.mxu0 0.0
        %474 = vmatmul.mubr.f32.gmra.mrb[0].mxu0 %v267
        %v475 = vpop.f32.mrb[0].mxu0
        %v476 = vadd.f32 %v256, %v475
        %v477 = vpop.f32.mrb[0].mxu0
        %478 = vdwg.mxu0
        %479 = vmatprep.subr.mxu0 0.0
        %480 = vmatpush1.msra.mxu0 %v233
        %481 = vmatprep.subr.mxu0 0.0
        %482 = vmatpush1.msra.mxu0 %v234
        %483 = vmatprep.subr.mxu0 0.0
        %484 = vmatpush1.msra.mxu0 %v235
        %485 = vmatprep.subr.mxu0 0.0
        %486 = vmatpush1.msra.mxu0 %v236
        %487 = vmatprep.subr.mxu0 0.0
        %488 = vmatpush1.msra.mxu0 0.0
        %489 = vmatprep.subr.mxu0 0.0
        %490 = vmatpush1.msra.mxu0 0.0
        %491 = vmatprep.subr.mxu0 0.0
        %492 = vmatpush1.msra.mxu0 0.0
        %493 = vmatprep.subr.mxu0 0.0
        %494 = vmatpush1.msra.mxu0 0.0
        %495 = vmatprep.subr.mxu0 0.0
        %496 = vmatpush1.msra.mxu0 0.0
        %497 = vmatprep.subr.mxu0 0.0
        %498 = vmatpush1.msra.mxu0 0.0
        %499 = vmatprep.subr.mxu0 0.0
        %500 = vmatpush1.msra.mxu0 0.0
        %501 = vmatprep.subr.mxu0 0.0
        %502 = vmatpush1.msra.mxu0 0.0
        %503 = vmatprep.subr.mxu0 0.0
        %504 = vmatpush1.msra.mxu0 0.0
        %505 = vmatprep.subr.mxu0 0.0
        %506 = vmatpush1.msra.mxu0 0.0
        %507 = vmatprep.subr.mxu0 0.0
        %508 = vmatpush1.msra.mxu0 0.0
        %509 = vmatprep.subr.mxu0 0.0
        %510 = vmatpush1.msra.mxu0 0.0
        %511 = vmatprep.subr.mxu0 0.0
        %512 = vmatpush1.msra.mxu0 0.0
        %513 = vmatprep.subr.mxu0 0.0
        %514 = vmatpush1.msra.mxu0 0.0
        %515 = vmatprep.subr.mxu0 0.0
        %516 = vmatpush1.msra.mxu0 0.0
        %517 = vmatprep.subr.mxu0 0.0
        %518 = vmatpush1.msra.mxu0 0.0
        %519 = vmatprep.subr.mxu0 0.0
        %520 = vmatpush1.msra.mxu0 0.0
        %521 = vmatprep.subr.mxu0 0.0
        %522 = vmatpush1.msra.mxu0 0.0
        %523 = vmatprep.subr.mxu0 0.0
        %524 = vmatpush1.msra.mxu0 0.0
        %525 = vmatprep.subr.mxu0 0.0
        %526 = vmatpush1.msra.mxu0 0.0
        %527 = vmatprep.subr.mxu0 0.0
        %528 = vmatpush1.msra.mxu0 0.0
        %529 = vmatprep.subr.mxu0 0.0
        %530 = vmatpush1.msra.mxu0 0.0
        %531 = vmatprep.subr.mxu0 0.0
        %532 = vmatpush1.msra.mxu0 0.0
        %533 = vmatprep.subr.mxu0 0.0
        %534 = vmatpush1.msra.mxu0 0.0
        %535 = vmatprep.subr.mxu0 0.0
        %536 = vmatpush1.msra.mxu0 0.0
        %537 = vmatprep.subr.mxu0 0.0
        %538 = vmatpush1.msra.mxu0 0.0
        %539 = vmatprep.subr.mxu0 0.0
        %540 = vmatpush1.msra.mxu0 0.0
        %541 = vmatprep.subr.mxu0 0.0
        %542 = vmatpush1.msra.mxu0 0.0
        %543 = vmatprep.mubr.f32.mxu0 0.0
        %544 = vmatmul.mubr.f32.gmra.mrb[0].mxu0 %v267
        %v545 = vpop.f32.mrb[0].mxu0
        %v546 = vadd.f32 %v260, %v545
        %v547 = vpop.f32.mrb[0].mxu0
        %548 = vdwg.mxu0
        %s549 = scalar_lea.vmem %s1, 128
        %v550 = vld [vmem:[%s549] sm:$0xff]
        %v551 = vld [vmem:[%s549 + $0x8] sm:$0xff]
        %v552 = vld [vmem:[%s549 + $0x10] sm:$0xff]
        %v553 = vld [vmem:[%s549 + $0x18] sm:$0xff]
        %v554 = vld [vmem:[%s549 + $0x20] sm:$0xff]
        %v555 = vld [vmem:[%s549 + $0x28] sm:$0xff]
        %v556 = vld [vmem:[%s549 + $0x30] sm:$0xff]
        %v557 = vld [vmem:[%s549 + $0x38] sm:$0xff]
        %v558 = vld [vmem:[%s549 + $0x40] sm:$0xff]
        %v559 = vld [vmem:[%s549 + $0x48] sm:$0xff]
        %v560 = vld [vmem:[%s549 + $0x50] sm:$0xff]
        %v561 = vld [vmem:[%s549 + $0x58] sm:$0xff]
        %v562 = vld [vmem:[%s549 + $0x60] sm:$0xff]
        %v563 = vld [vmem:[%s549 + $0x68] sm:$0xff]
        %v564 = vld [vmem:[%s549 + $0x70] sm:$0xff]
        %v565 = vld [vmem:[%s549 + $0x78] sm:$0xff]
        %s566 = scalar_lea.vmem %s2, 4
        %v567 = vld [vmem:[%s566] sm:$0x1]
        %v568 = vld [vmem:[%s566 + $0x1] sm:$0x1]
        %v569 = vld [vmem:[%s566 + $0x2] sm:$0x1]
        %v570 = vld [vmem:[%s566 + $0x3] sm:$0x1]
        %v575 = vlaneseq
        %v576 = vshrl.u32 %v575, 7
        %v577 = vsub.s32 0, %v576
        %v578 = vrot.slane %v567, %v577
        %v579 = vlaneseq
        %v580 = vshrl.u32 %v579, 7
        %v581 = vsub.s32 0, %v580
        %v582 = vrot.slane %v568, %v581
        %v583 = vlaneseq
        %v584 = vshrl.u32 %v583, 7
        %v585 = vsub.s32 0, %v584
        %v586 = vrot.slane %v569, %v585
        %v587 = vlaneseq
        %v588 = vshrl.u32 %v587, 7
        %v589 = vsub.s32 0, %v588
        %v590 = vrot.slane %v570, %v589
        %595 = vmatprep.subr.mxu0 0.0
        %596 = vmatpush1.msra.mxu0 %v550
        %597 = vmatprep.subr.mxu0 0.0
        %598 = vmatpush1.msra.mxu0 %v551
        %599 = vmatprep.subr.mxu0 0.0
        %600 = vmatpush1.msra.mxu0 %v552
        %601 = vmatprep.subr.mxu0 0.0
        %602 = vmatpush1.msra.mxu0 %v553
        %603 = vmatprep.subr.mxu0 0.0
        %604 = vmatpush1.msra.mxu0 0.0
        %605 = vmatprep.subr.mxu0 0.0
        %606 = vmatpush1.msra.mxu0 0.0
        %607 = vmatprep.subr.mxu0 0.0
        %608 = vmatpush1.msra.mxu0 0.0
        %609 = vmatprep.subr.mxu0 0.0
        %610 = vmatpush1.msra.mxu0 0.0
        %611 = vmatprep.subr.mxu0 0.0
        %612 = vmatpush1.msra.mxu0 0.0
        %613 = vmatprep.subr.mxu0 0.0
        %614 = vmatpush1.msra.mxu0 0.0
        %615 = vmatprep.subr.mxu0 0.0
        %616 = vmatpush1.msra.mxu0 0.0
        %617 = vmatprep.subr.mxu0 0.0
        %618 = vmatpush1.msra.mxu0 0.0
        %619 = vmatprep.subr.mxu0 0.0
        %620 = vmatpush1.msra.mxu0 0.0
        %621 = vmatprep.subr.mxu0 0.0
        %622 = vmatpush1.msra.mxu0 0.0
        %623 = vmatprep.subr.mxu0 0.0
        %624 = vmatpush1.msra.mxu0 0.0
        %625 = vmatprep.subr.mxu0 0.0
        %626 = vmatpush1.msra.mxu0 0.0
        %627 = vmatprep.subr.mxu0 0.0
        %628 = vmatpush1.msra.mxu0 0.0
        %629 = vmatprep.subr.mxu0 0.0
        %630 = vmatpush1.msra.mxu0 0.0
        %631 = vmatprep.subr.mxu0 0.0
        %632 = vmatpush1.msra.mxu0 0.0
        %633 = vmatprep.subr.mxu0 0.0
        %634 = vmatpush1.msra.mxu0 0.0
        %635 = vmatprep.subr.mxu0 0.0
        %636 = vmatpush1.msra.mxu0 0.0
        %637 = vmatprep.subr.mxu0 0.0
        %638 = vmatpush1.msra.mxu0 0.0
        %639 = vmatprep.subr.mxu0 0.0
        %640 = vmatpush1.msra.mxu0 0.0
        %641 = vmatprep.subr.mxu0 0.0
        %642 = vmatpush1.msra.mxu0 0.0
        %643 = vmatprep.subr.mxu0 0.0
        %644 = vmatpush1.msra.mxu0 0.0
        %645 = vmatprep.subr.mxu0 0.0
        %646 = vmatpush1.msra.mxu0 0.0
        %647 = vmatprep.subr.mxu0 0.0
        %648 = vmatpush1.msra.mxu0 0.0
        %649 = vmatprep.subr.mxu0 0.0
        %650 = vmatpush1.msra.mxu0 0.0
        %651 = vmatprep.subr.mxu0 0.0
        %652 = vmatpush1.msra.mxu0 0.0
        %653 = vmatprep.subr.mxu0 0.0
        %654 = vmatpush1.msra.mxu0 0.0
        %655 = vmatprep.subr.mxu0 0.0
        %656 = vmatpush1.msra.mxu0 0.0
        %657 = vmatprep.subr.mxu0 0.0
        %658 = vmatpush1.msra.mxu0 0.0
        %659 = vmatprep.mubr.f32.mxu0 0.0
        %660 = vmatmul.mubr.f32.gmra.mrb[0].mxu0 %v267
        %v661 = vpop.f32.mrb[0].mxu0
        %v662 = vadd.f32 %v578, %v661
        %v663 = vpop.f32.mrb[0].mxu0
        %664 = vdwg.mxu0
        %665 = vmatprep.subr.mxu0 0.0
        %666 = vmatpush1.msra.mxu0 %v554
        %667 = vmatprep.subr.mxu0 0.0
        %668 = vmatpush1.msra.mxu0 %v555
        %669 = vmatprep.subr.mxu0 0.0
        %670 = vmatpush1.msra.mxu0 %v556
        %671 = vmatprep.subr.mxu0 0.0
        %672 = vmatpush1.msra.mxu0 %v557
        %673 = vmatprep.subr.mxu0 0.0
        %674 = vmatpush1.msra.mxu0 0.0
        %675 = vmatprep.subr.mxu0 0.0
        %676 = vmatpush1.msra.mxu0 0.0
        %677 = vmatprep.subr.mxu0 0.0
        %678 = vmatpush1.msra.mxu0 0.0
        %679 = vmatprep.subr.mxu0 0.0
        %680 = vmatpush1.msra.mxu0 0.0
        %681 = vmatprep.subr.mxu0 0.0
        %682 = vmatpush1.msra.mxu0 0.0
        %683 = vmatprep.subr.mxu0 0.0
        %684 = vmatpush1.msra.mxu0 0.0
        %685 = vmatprep.subr.mxu0 0.0
        %686 = vmatpush1.msra.mxu0 0.0
        %687 = vmatprep.subr.mxu0 0.0
        %688 = vmatpush1.msra.mxu0 0.0
        %689 = vmatprep.subr.mxu0 0.0
        %690 = vmatpush1.msra.mxu0 0.0
        %691 = vmatprep.subr.mxu0 0.0
        %692 = vmatpush1.msra.mxu0 0.0
        %693 = vmatprep.subr.mxu0 0.0
        %694 = vmatpush1.msra.mxu0 0.0
        %695 = vmatprep.subr.mxu0 0.0
        %696 = vmatpush1.msra.mxu0 0.0
        %697 = vmatprep.subr.mxu0 0.0
        %698 = vmatpush1.msra.mxu0 0.0
        %699 = vmatprep.subr.mxu0 0.0
        %700 = vmatpush1.msra.mxu0 0.0
        %701 = vmatprep.subr.mxu0 0.0
        %702 = vmatpush1.msra.mxu0 0.0
        %703 = vmatprep.subr.mxu0 0.0
        %704 = vmatpush1.msra.mxu0 0.0
        %705 = vmatprep.subr.mxu0 0.0
        %706 = vmatpush1.msra.mxu0 0.0
        %707 = vmatprep.subr.mxu0 0.0
        %708 = vmatpush1.msra.mxu0 0.0
        %709 = vmatprep.subr.mxu0 0.0
        %710 = vmatpush1.msra.mxu0 0.0
        %711 = vmatprep.subr.mxu0 0.0
        %712 = vmatpush1.msra.mxu0 0.0
        %713 = vmatprep.subr.mxu0 0.0
        %714 = vmatpush1.msra.mxu0 0.0
        %715 = vmatprep.subr.mxu0 0.0
        %716 = vmatpush1.msra.mxu0 0.0
        %717 = vmatprep.subr.mxu0 0.0
        %718 = vmatpush1.msra.mxu0 0.0
        %719 = vmatprep.subr.mxu0 0.0
        %720 = vmatpush1.msra.mxu0 0.0
        %721 = vmatprep.subr.mxu0 0.0
        %722 = vmatpush1.msra.mxu0 0.0
        %723 = vmatprep.subr.mxu0 0.0
        %724 = vmatpush1.msra.mxu0 0.0
        %725 = vmatprep.subr.mxu0 0.0
        %726 = vmatpush1.msra.mxu0 0.0
        %727 = vmatprep.subr.mxu0 0.0
        %728 = vmatpush1.msra.mxu0 0.0
        %729 = vmatprep.mubr.f32.mxu0 0.0
        %730 = vmatmul.mubr.f32.gmra.mrb[0].mxu0 %v267
        %v731 = vpop.f32.mrb[0].mxu0
        %v732 = vadd.f32 %v582, %v731
        %v733 = vpop.f32.mrb[0].mxu0
        %734 = vdwg.mxu0
        %735 = vmatprep.subr.mxu0 0.0
        %736 = vmatpush1.msra.mxu0 %v558
        %737 = vmatprep.subr.mxu0 0.0
        %738 = vmatpush1.msra.mxu0 %v559
        %739 = vmatprep.subr.mxu0 0.0
        %740 = vmatpush1.msra.mxu0 %v560
        %741 = vmatprep.subr.mxu0 0.0
        %742 = vmatpush1.msra.mxu0 %v561
        %743 = vmatprep.subr.mxu0 0.0
        %744 = vmatpush1.msra.mxu0 0.0
        %745 = vmatprep.subr.mxu0 0.0
        %746 = vmatpush1.msra.mxu0 0.0
        %747 = vmatprep.subr.mxu0 0.0
        %748 = vmatpush1.msra.mxu0 0.0
        %749 = vmatprep.subr.mxu0 0.0
        %750 = vmatpush1.msra.mxu0 0.0
        %751 = vmatprep.subr.mxu0 0.0
        %752 = vmatpush1.msra.mxu0 0.0
        %753 = vmatprep.subr.mxu0 0.0
        %754 = vmatpush1.msra.mxu0 0.0
        %755 = vmatprep.subr.mxu0 0.0
        %756 = vmatpush1.msra.mxu0 0.0
        %757 = vmatprep.subr.mxu0 0.0
        %758 = vmatpush1.msra.mxu0 0.0
        %759 = vmatprep.subr.mxu0 0.0
        %760 = vmatpush1.msra.mxu0 0.0
        %761 = vmatprep.subr.mxu0 0.0
        %762 = vmatpush1.msra.mxu0 0.0
        %763 = vmatprep.subr.mxu0 0.0
        %764 = vmatpush1.msra.mxu0 0.0
        %765 = vmatprep.subr.mxu0 0.0
        %766 = vmatpush1.msra.mxu0 0.0
        %767 = vmatprep.subr.mxu0 0.0
        %768 = vmatpush1.msra.mxu0 0.0
        %769 = vmatprep.subr.mxu0 0.0
        %770 = vmatpush1.msra.mxu0 0.0
        %771 = vmatprep.subr.mxu0 0.0
        %772 = vmatpush1.msra.mxu0 0.0
        %773 = vmatprep.subr.mxu0 0.0
        %774 = vmatpush1.msra.mxu0 0.0
        %775 = vmatprep.subr.mxu0 0.0
        %776 = vmatpush1.msra.mxu0 0.0
        %777 = vmatprep.subr.mxu0 0.0
        %778 = vmatpush1.msra.mxu0 0.0
        %779 = vmatprep.subr.mxu0 0.0
        %780 = vmatpush1.msra.mxu0 0.0
        %781 = vmatprep.subr.mxu0 0.0
        %782 = vmatpush1.msra.mxu0 0.0
        %783 = vmatprep.subr.mxu0 0.0
        %784 = vmatpush1.msra.mxu0 0.0
        %785 = vmatprep.subr.mxu0 0.0
        %786 = vmatpush1.msra.mxu0 0.0
        %787 = vmatprep.subr.mxu0 0.0
        %788 = vmatpush1.msra.mxu0 0.0
        %789 = vmatprep.subr.mxu0 0.0
        %790 = vmatpush1.msra.mxu0 0.0
        %791 = vmatprep.subr.mxu0 0.0
        %792 = vmatpush1.msra.mxu0 0.0
        %793 = vmatprep.subr.mxu0 0.0
        %794 = vmatpush1.msra.mxu0 0.0
        %795 = vmatprep.subr.mxu0 0.0
        %796 = vmatpush1.msra.mxu0 0.0
        %797 = vmatprep.subr.mxu0 0.0
        %798 = vmatpush1.msra.mxu0 0.0
        %799 = vmatprep.mubr.f32.mxu0 0.0
        %800 = vmatmul.mubr.f32.gmra.mrb[0].mxu0 %v267
        %v801 = vpop.f32.mrb[0].mxu0
        %v802 = vadd.f32 %v586, %v801
        %v803 = vpop.f32.mrb[0].mxu0
        %804 = vdwg.mxu0
        %805 = vmatprep.subr.mxu0 0.0
        %806 = vmatpush1.msra.mxu0 %v562
        %807 = vmatprep.subr.mxu0 0.0
        %808 = vmatpush1.msra.mxu0 %v563
        %809 = vmatprep.subr.mxu0 0.0
        %810 = vmatpush1.msra.mxu0 %v564
        %811 = vmatprep.subr.mxu0 0.0
        %812 = vmatpush1.msra.mxu0 %v565
        %813 = vmatprep.subr.mxu0 0.0
        %814 = vmatpush1.msra.mxu0 0.0
        %815 = vmatprep.subr.mxu0 0.0
        %816 = vmatpush1.msra.mxu0 0.0
        %817 = vmatprep.subr.mxu0 0.0
        %818 = vmatpush1.msra.mxu0 0.0
        %819 = vmatprep.subr.mxu0 0.0
        %820 = vmatpush1.msra.mxu0 0.0
        %821 = vmatprep.subr.mxu0 0.0
        %822 = vmatpush1.msra.mxu0 0.0
        %823 = vmatprep.subr.mxu0 0.0
        %824 = vmatpush1.msra.mxu0 0.0
        %825 = vmatprep.subr.mxu0 0.0
        %826 = vmatpush1.msra.mxu0 0.0
        %827 = vmatprep.subr.mxu0 0.0
        %828 = vmatpush1.msra.mxu0 0.0
        %829 = vmatprep.subr.mxu0 0.0
        %830 = vmatpush1.msra.mxu0 0.0
        %831 = vmatprep.subr.mxu0 0.0
        %832 = vmatpush1.msra.mxu0 0.0
        %833 = vmatprep.subr.mxu0 0.0
        %834 = vmatpush1.msra.mxu0 0.0
        %835 = vmatprep.subr.mxu0 0.0
        %836 = vmatpush1.msra.mxu0 0.0
        %837 = vmatprep.subr.mxu0 0.0
        %838 = vmatpush1.msra.mxu0 0.0
        %839 = vmatprep.subr.mxu0 0.0
        %840 = vmatpush1.msra.mxu0 0.0
        %841 = vmatprep.subr.mxu0 0.0
        %842 = vmatpush1.msra.mxu0 0.0
        %843 = vmatprep.subr.mxu0 0.0
        %844 = vmatpush1.msra.mxu0 0.0
        %845 = vmatprep.subr.mxu0 0.0
        %846 = vmatpush1.msra.mxu0 0.0
        %847 = vmatprep.subr.mxu0 0.0
        %848 = vmatpush1.msra.mxu0 0.0
        %849 = vmatprep.subr.mxu0 0.0
        %850 = vmatpush1.msra.mxu0 0.0
        %851 = vmatprep.subr.mxu0 0.0
        %852 = vmatpush1.msra.mxu0 0.0
        %853 = vmatprep.subr.mxu0 0.0
        %854 = vmatpush1.msra.mxu0 0.0
        %855 = vmatprep.subr.mxu0 0.0
        %856 = vmatpush1.msra.mxu0 0.0
        %857 = vmatprep.subr.mxu0 0.0
        %858 = vmatpush1.msra.mxu0 0.0
        %859 = vmatprep.subr.mxu0 0.0
        %860 = vmatpush1.msra.mxu0 0.0
        %861 = vmatprep.subr.mxu0 0.0
        %862 = vmatpush1.msra.mxu0 0.0
        %863 = vmatprep.subr.mxu0 0.0
        %864 = vmatpush1.msra.mxu0 0.0
        %865 = vmatprep.subr.mxu0 0.0
        %866 = vmatpush1.msra.mxu0 0.0
        %867 = vmatprep.subr.mxu0 0.0
        %868 = vmatpush1.msra.mxu0 0.0
        %869 = vmatprep.mubr.f32.mxu0 0.0
        %870 = vmatmul.mubr.f32.gmra.mrb[0].mxu0 %v267
        %v871 = vpop.f32.mrb[0].mxu0
        %v872 = vadd.f32 %v590, %v871
        %v873 = vpop.f32.mrb[0].mxu0
        %874 = vdwg.mxu0
        %s875 = scalar_lea.vmem %s1, 256
        %v876 = vld [vmem:[%s875] sm:$0xff]
        %v877 = vld [vmem:[%s875 + $0x8] sm:$0xff]
        %v878 = vld [vmem:[%s875 + $0x10] sm:$0xff]
        %v879 = vld [vmem:[%s875 + $0x18] sm:$0xff]
        %v880 = vld [vmem:[%s875 + $0x20] sm:$0xff]
        %v881 = vld [vmem:[%s875 + $0x28] sm:$0xff]
        %v882 = vld [vmem:[%s875 + $0x30] sm:$0xff]
        %v883 = vld [vmem:[%s875 + $0x38] sm:$0xff]
        %v884 = vld [vmem:[%s875 + $0x40] sm:$0xff]
        %v885 = vld [vmem:[%s875 + $0x48] sm:$0xff]
        %v886 = vld [vmem:[%s875 + $0x50] sm:$0xff]
        %v887 = vld [vmem:[%s875 + $0x58] sm:$0xff]
        %v888 = vld [vmem:[%s875 + $0x60] sm:$0xff]
        %v889 = vld [vmem:[%s875 + $0x68] sm:$0xff]
        %v890 = vld [vmem:[%s875 + $0x70] sm:$0xff]
        %v891 = vld [vmem:[%s875 + $0x78] sm:$0xff]
        %s892 = scalar_lea.vmem %s2, 8
        %v893 = vld [vmem:[%s892] sm:$0x1]
        %v894 = vld [vmem:[%s892 + $0x1] sm:$0x1]
        %v895 = vld [vmem:[%s892 + $0x2] sm:$0x1]
        %v896 = vld [vmem:[%s892 + $0x3] sm:$0x1]
        %v901 = vlaneseq
        %v902 = vshrl.u32 %v901, 7
        %v903 = vsub.s32 0, %v902
        %v904 = vrot.slane %v893, %v903
        %v905 = vlaneseq
        %v906 = vshrl.u32 %v905, 7
        %v907 = vsub.s32 0, %v906
        %v908 = vrot.slane %v894, %v907
        %v909 = vlaneseq
        %v910 = vshrl.u32 %v909, 7
        %v911 = vsub.s32 0, %v910
        %v912 = vrot.slane %v895, %v911
        %v913 = vlaneseq
        %v914 = vshrl.u32 %v913, 7
        %v915 = vsub.s32 0, %v914
        %v916 = vrot.slane %v896, %v915
        %921 = vmatprep.subr.mxu0 0.0
        %922 = vmatpush1.msra.mxu0 %v876
        %923 = vmatprep.subr.mxu0 0.0
        %924 = vmatpush1.msra.mxu0 %v877
        %925 = vmatprep.subr.mxu0 0.0
        %926 = vmatpush1.msra.mxu0 %v878
        %927 = vmatprep.subr.mxu0 0.0
        %928 = vmatpush1.msra.mxu0 %v879
        %929 = vmatprep.subr.mxu0 0.0
        %930 = vmatpush1.msra.mxu0 0.0
        %931 = vmatprep.subr.mxu0 0.0
        %932 = vmatpush1.msra.mxu0 0.0
        %933 = vmatprep.subr.mxu0 0.0
        %934 = vmatpush1.msra.mxu0 0.0
        %935 = vmatprep.subr.mxu0 0.0
        %936 = vmatpush1.msra.mxu0 0.0
        %937 = vmatprep.subr.mxu0 0.0
        %938 = vmatpush1.msra.mxu0 0.0
        %939 = vmatprep.subr.mxu0 0.0
        %940 = vmatpush1.msra.mxu0 0.0
        %941 = vmatprep.subr.mxu0 0.0
        %942 = vmatpush1.msra.mxu0 0.0
        %943 = vmatprep.subr.mxu0 0.0
        %944 = vmatpush1.msra.mxu0 0.0
        %945 = vmatprep.subr.mxu0 0.0
        %946 = vmatpush1.msra.mxu0 0.0
        %947 = vmatprep.subr.mxu0 0.0
        %948 = vmatpush1.msra.mxu0 0.0
        %949 = vmatprep.subr.mxu0 0.0
        %950 = vmatpush1.msra.mxu0 0.0
        %951 = vmatprep.subr.mxu0 0.0
        %952 = vmatpush1.msra.mxu0 0.0
        %953 = vmatprep.subr.mxu0 0.0
        %954 = vmatpush1.msra.mxu0 0.0
        %955 = vmatprep.subr.mxu0 0.0
        %956 = vmatpush1.msra.mxu0 0.0
        %957 = vmatprep.subr.mxu0 0.0
        %958 = vmatpush1.msra.mxu0 0.0
        %959 = vmatprep.subr.mxu0 0.0
        %960 = vmatpush1.msra.mxu0 0.0
        %961 = vmatprep.subr.mxu0 0.0
        %962 = vmatpush1.msra.mxu0 0.0
        %963 = vmatprep.subr.mxu0 0.0
        %964 = vmatpush1.msra.mxu0 0.0
        %965 = vmatprep.subr.mxu0 0.0
        %966 = vmatpush1.msra.mxu0 0.0
        %967 = vmatprep.subr.mxu0 0.0
        %968 = vmatpush1.msra.mxu0 0.0
        %969 = vmatprep.subr.mxu0 0.0
        %970 = vmatpush1.msra.mxu0 0.0
        %971 = vmatprep.subr.mxu0 0.0
        %972 = vmatpush1.msra.mxu0 0.0
        %973 = vmatprep.subr.mxu0 0.0
        %974 = vmatpush1.msra.mxu0 0.0
        %975 = vmatprep.subr.mxu0 0.0
        %976 = vmatpush1.msra.mxu0 0.0
        %977 = vmatprep.subr.mxu0 0.0
        %978 = vmatpush1.msra.mxu0 0.0
        %979 = vmatprep.subr.mxu0 0.0
        %980 = vmatpush1.msra.mxu0 0.0
        %981 = vmatprep.subr.mxu0 0.0
        %982 = vmatpush1.msra.mxu0 0.0
        %983 = vmatprep.subr.mxu0 0.0
        %984 = vmatpush1.msra.mxu0 0.0
        %985 = vmatprep.mubr.f32.mxu0 0.0
        %986 = vmatmul.mubr.f32.gmra.mrb[0].mxu0 %v267
        %v987 = vpop.f32.mrb[0].mxu0
        %v988 = vadd.f32 %v904, %v987
        %v989 = vpop.f32.mrb[0].mxu0
        %990 = vdwg.mxu0
        %991 = vmatprep.subr.mxu0 0.0
        %992 = vmatpush1.msra.mxu0 %v880
        %993 = vmatprep.subr.mxu0 0.0
        %994 = vmatpush1.msra.mxu0 %v881
        %995 = vmatprep.subr.mxu0 0.0
        %996 = vmatpush1.msra.mxu0 %v882
        %997 = vmatprep.subr.mxu0 0.0
        %998 = vmatpush1.msra.mxu0 %v883
        %999 = vmatprep.subr.mxu0 0.0
        %1000 = vmatpush1.msra.mxu0 0.0
        %1001 = vmatprep.subr.mxu0 0.0
        %1002 = vmatpush1.msra.mxu0 0.0
        %1003 = vmatprep.subr.mxu0 0.0
        %1004 = vmatpush1.msra.mxu0 0.0
        %1005 = vmatprep.subr.mxu0 0.0
        %1006 = vmatpush1.msra.mxu0 0.0
        %1007 = vmatprep.subr.mxu0 0.0
        %1008 = vmatpush1.msra.mxu0 0.0
        %1009 = vmatprep.subr.mxu0 0.0
        %1010 = vmatpush1.msra.mxu0 0.0
        %1011 = vmatprep.subr.mxu0 0.0
        %1012 = vmatpush1.msra.mxu0 0.0
        %1013 = vmatprep.subr.mxu0 0.0
        %1014 = vmatpush1.msra.mxu0 0.0
        %1015 = vmatprep.subr.mxu0 0.0
        %1016 = vmatpush1.msra.mxu0 0.0
        %1017 = vmatprep.subr.mxu0 0.0
        %1018 = vmatpush1.msra.mxu0 0.0
        %1019 = vmatprep.subr.mxu0 0.0
        %1020 = vmatpush1.msra.mxu0 0.0
        %1021 = vmatprep.subr.mxu0 0.0
        %1022 = vmatpush1.msra.mxu0 0.0
        %1023 = vmatprep.subr.mxu0 0.0
        %1024 = vmatpush1.msra.mxu0 0.0
        %1025 = vmatprep.subr.mxu0 0.0
        %1026 = vmatpush1.msra.mxu0 0.0
        %1027 = vmatprep.subr.mxu0 0.0
        %1028 = vmatpush1.msra.mxu0 0.0
        %1029 = vmatprep.subr.mxu0 0.0
        %1030 = vmatpush1.msra.mxu0 0.0
        %1031 = vmatprep.subr.mxu0 0.0
        %1032 = vmatpush1.msra.mxu0 0.0
        %1033 = vmatprep.subr.mxu0 0.0
        %1034 = vmatpush1.msra.mxu0 0.0
        %1035 = vmatprep.subr.mxu0 0.0
        %1036 = vmatpush1.msra.mxu0 0.0
        %1037 = vmatprep.subr.mxu0 0.0
        %1038 = vmatpush1.msra.mxu0 0.0
        %1039 = vmatprep.subr.mxu0 0.0
        %1040 = vmatpush1.msra.mxu0 0.0
        %1041 = vmatprep.subr.mxu0 0.0
        %1042 = vmatpush1.msra.mxu0 0.0
        %1043 = vmatprep.subr.mxu0 0.0
        %1044 = vmatpush1.msra.mxu0 0.0
        %1045 = vmatprep.subr.mxu0 0.0
        %1046 = vmatpush1.msra.mxu0 0.0
        %1047 = vmatprep.subr.mxu0 0.0
        %1048 = vmatpush1.msra.mxu0 0.0
        %1049 = vmatprep.subr.mxu0 0.0
        %1050 = vmatpush1.msra.mxu0 0.0
        %1051 = vmatprep.subr.mxu0 0.0
        %1052 = vmatpush1.msra.mxu0 0.0
        %1053 = vmatprep.subr.mxu0 0.0
        %1054 = vmatpush1.msra.mxu0 0.0
        %1055 = vmatprep.mubr.f32.mxu0 0.0
        %1056 = vmatmul.mubr.f32.gmra.mrb[0].mxu0 %v267
        %v1057 = vpop.f32.mrb[0].mxu0
        %v1058 = vadd.f32 %v908, %v1057
        %v1059 = vpop.f32.mrb[0].mxu0
        %1060 = vdwg.mxu0
        %1061 = vmatprep.subr.mxu0 0.0
        %1062 = vmatpush1.msra.mxu0 %v884
        %1063 = vmatprep.subr.mxu0 0.0
        %1064 = vmatpush1.msra.mxu0 %v885
        %1065 = vmatprep.subr.mxu0 0.0
        %1066 = vmatpush1.msra.mxu0 %v886
        %1067 = vmatprep.subr.mxu0 0.0
        %1068 = vmatpush1.msra.mxu0 %v887
        %1069 = vmatprep.subr.mxu0 0.0
        %1070 = vmatpush1.msra.mxu0 0.0
        %1071 = vmatprep.subr.mxu0 0.0
        %1072 = vmatpush1.msra.mxu0 0.0
        %1073 = vmatprep.subr.mxu0 0.0
        %1074 = vmatpush1.msra.mxu0 0.0
        %1075 = vmatprep.subr.mxu0 0.0
        %1076 = vmatpush1.msra.mxu0 0.0
        %1077 = vmatprep.subr.mxu0 0.0
        %1078 = vmatpush1.msra.mxu0 0.0
        %1079 = vmatprep.subr.mxu0 0.0
        %1080 = vmatpush1.msra.mxu0 0.0
        %1081 = vmatprep.subr.mxu0 0.0
        %1082 = vmatpush1.msra.mxu0 0.0
        %1083 = vmatprep.subr.mxu0 0.0
        %1084 = vmatpush1.msra.mxu0 0.0
        %1085 = vmatprep.subr.mxu0 0.0
        %1086 = vmatpush1.msra.mxu0 0.0
        %1087 = vmatprep.subr.mxu0 0.0
        %1088 = vmatpush1.msra.mxu0 0.0
        %1089 = vmatprep.subr.mxu0 0.0
        %1090 = vmatpush1.msra.mxu0 0.0
        %1091 = vmatprep.subr.mxu0 0.0
        %1092 = vmatpush1.msra.mxu0 0.0
        %1093 = vmatprep.subr.mxu0 0.0
        %1094 = vmatpush1.msra.mxu0 0.0
        %1095 = vmatprep.subr.mxu0 0.0
        %1096 = vmatpush1.msra.mxu0 0.0
        %1097 = vmatprep.subr.mxu0 0.0
        %1098 = vmatpush1.msra.mxu0 0.0
        %1099 = vmatprep.subr.mxu0 0.0
        %1100 = vmatpush1.msra.mxu0 0.0
        %1101 = vmatprep.subr.mxu0 0.0
        %1102 = vmatpush1.msra.mxu0 0.0
        %1103 = vmatprep.subr.mxu0 0.0
        %1104 = vmatpush1.msra.mxu0 0.0
        %1105 = vmatprep.subr.mxu0 0.0
        %1106 = vmatpush1.msra.mxu0 0.0
        %1107 = vmatprep.subr.mxu0 0.0
        %1108 = vmatpush1.msra.mxu0 0.0
        %1109 = vmatprep.subr.mxu0 0.0
        %1110 = vmatpush1.msra.mxu0 0.0
        %1111 = vmatprep.subr.mxu0 0.0
        %1112 = vmatpush1.msra.mxu0 0.0
        %1113 = vmatprep.subr.mxu0 0.0
        %1114 = vmatpush1.msra.mxu0 0.0
        %1115 = vmatprep.subr.mxu0 0.0
        %1116 = vmatpush1.msra.mxu0 0.0
        %1117 = vmatprep.subr.mxu0 0.0
        %1118 = vmatpush1.msra.mxu0 0.0
        %1119 = vmatprep.subr.mxu0 0.0
        %1120 = vmatpush1.msra.mxu0 0.0
        %1121 = vmatprep.subr.mxu0 0.0
        %1122 = vmatpush1.msra.mxu0 0.0
        %1123 = vmatprep.subr.mxu0 0.0
        %1124 = vmatpush1.msra.mxu0 0.0
        %1125 = vmatprep.mubr.f32.mxu0 0.0
        %1126 = vmatmul.mubr.f32.gmra.mrb[0].mxu0 %v267
        %v1127 = vpop.f32.mrb[0].mxu0
        %v1128 = vadd.f32 %v912, %v1127
        %v1129 = vpop.f32.mrb[0].mxu0
        %1130 = vdwg.mxu0
        %1131 = vmatprep.subr.mxu0 0.0
        %1132 = vmatpush1.msra.mxu0 %v888
        %1133 = vmatprep.subr.mxu0 0.0
        %1134 = vmatpush1.msra.mxu0 %v889
        %1135 = vmatprep.subr.mxu0 0.0
        %1136 = vmatpush1.msra.mxu0 %v890
        %1137 = vmatprep.subr.mxu0 0.0
        %1138 = vmatpush1.msra.mxu0 %v891
        %1139 = vmatprep.subr.mxu0 0.0
        %1140 = vmatpush1.msra.mxu0 0.0
        %1141 = vmatprep.subr.mxu0 0.0
        %1142 = vmatpush1.msra.mxu0 0.0
        %1143 = vmatprep.subr.mxu0 0.0
        %1144 = vmatpush1.msra.mxu0 0.0
        %1145 = vmatprep.subr.mxu0 0.0
        %1146 = vmatpush1.msra.mxu0 0.0
        %1147 = vmatprep.subr.mxu0 0.0
        %1148 = vmatpush1.msra.mxu0 0.0
        %1149 = vmatprep.subr.mxu0 0.0
        %1150 = vmatpush1.msra.mxu0 0.0
        %1151 = vmatprep.subr.mxu0 0.0
        %1152 = vmatpush1.msra.mxu0 0.0
        %1153 = vmatprep.subr.mxu0 0.0
        %1154 = vmatpush1.msra.mxu0 0.0
        %1155 = vmatprep.subr.mxu0 0.0
        %1156 = vmatpush1.msra.mxu0 0.0
        %1157 = vmatprep.subr.mxu0 0.0
        %1158 = vmatpush1.msra.mxu0 0.0
        %1159 = vmatprep.subr.mxu0 0.0
        %1160 = vmatpush1.msra.mxu0 0.0
        %1161 = vmatprep.subr.mxu0 0.0
        %1162 = vmatpush1.msra.mxu0 0.0
        %1163 = vmatprep.subr.mxu0 0.0
        %1164 = vmatpush1.msra.mxu0 0.0
        %1165 = vmatprep.subr.mxu0 0.0
        %1166 = vmatpush1.msra.mxu0 0.0
        %1167 = vmatprep.subr.mxu0 0.0
        %1168 = vmatpush1.msra.mxu0 0.0
        %1169 = vmatprep.subr.mxu0 0.0
        %1170 = vmatpush1.msra.mxu0 0.0
        %1171 = vmatprep.subr.mxu0 0.0
        %1172 = vmatpush1.msra.mxu0 0.0
        %1173 = vmatprep.subr.mxu0 0.0
        %1174 = vmatpush1.msra.mxu0 0.0
        %1175 = vmatprep.subr.mxu0 0.0
        %1176 = vmatpush1.msra.mxu0 0.0
        %1177 = vmatprep.subr.mxu0 0.0
        %1178 = vmatpush1.msra.mxu0 0.0
        %1179 = vmatprep.subr.mxu0 0.0
        %1180 = vmatpush1.msra.mxu0 0.0
        %1181 = vmatprep.subr.mxu0 0.0
        %1182 = vmatpush1.msra.mxu0 0.0
        %1183 = vmatprep.subr.mxu0 0.0
        %1184 = vmatpush1.msra.mxu0 0.0
        %1185 = vmatprep.subr.mxu0 0.0
        %1186 = vmatpush1.msra.mxu0 0.0
        %1187 = vmatprep.subr.mxu0 0.0
        %1188 = vmatpush1.msra.mxu0 0.0
        %1189 = vmatprep.subr.mxu0 0.0
        %1190 = vmatpush1.msra.mxu0 0.0
        %1191 = vmatprep.subr.mxu0 0.0
        %1192 = vmatpush1.msra.mxu0 0.0
        %1193 = vmatprep.subr.mxu0 0.0
        %1194 = vmatpush1.msra.mxu0 0.0
        %1195 = vmatprep.mubr.f32.mxu0 0.0
        %1196 = vmatmul.mubr.f32.gmra.mrb[0].mxu0 %v267
        %v1197 = vpop.f32.mrb[0].mxu0
        %v1198 = vadd.f32 %v916, %v1197
        %v1199 = vpop.f32.mrb[0].mxu0
        %1200 = vdwg.mxu0
        %vm1201 = vcmask 64512
        %v1203 = vsel %vm1201, %v336, 0
        %v1206 = vsel %vm1201, %v662, 0
        %1208 = vmatprep.subr.mxu0 0.0
        %1209 = vmatpush1.xpose.msra.mxu0 %v1206
        %1210 = vmatprep.subr.mxu0 0.0
        %1211 = vmatpush1.xpose.msra.mxu0 0.0
        %1212 = vmatprep.subr.mxu0 0.0
        %1213 = vmatpush1.xpose.msra.mxu0 0.0
        %1214 = vmatprep.subr.mxu0 0.0
        %1215 = vmatpush1.xpose.msra.mxu0 0.0
        %1216 = vmatprep.subr.mxu0 0.0
        %1217 = vmatpush1.xpose.msra.mxu0 0.0
        %1218 = vmatprep.subr.mxu0 0.0
        %1219 = vmatpush1.xpose.msra.mxu0 0.0
        %1220 = vmatprep.subr.mxu0 0.0
        %1221 = vmatpush1.xpose.msra.mxu0 0.0
        %1222 = vmatprep.subr.mxu0 0.0
        %1223 = vmatpush1.xpose.msra.mxu0 0.0
        %1224 = vmatprep.subr.mxu0 0.0
        %1225 = vmatpush1.xpose.msra.mxu0 0.0
        %1226 = vmatprep.subr.mxu0 0.0
        %1227 = vmatpush1.xpose.msra.mxu0 0.0
        %1228 = vmatprep.subr.mxu0 0.0
        %1229 = vmatpush1.xpose.msra.mxu0 0.0
        %1230 = vmatprep.subr.mxu0 0.0
        %1231 = vmatpush1.xpose.msra.mxu0 0.0
        %1232 = vmatprep.subr.mxu0 0.0
        %1233 = vmatpush1.xpose.msra.mxu0 0.0
        %1234 = vmatprep.subr.mxu0 0.0
        %1235 = vmatpush1.xpose.msra.mxu0 0.0
        %1236 = vmatprep.subr.mxu0 0.0
        %1237 = vmatpush1.xpose.msra.mxu0 0.0
        %1238 = vmatprep.subr.mxu0 0.0
        %1239 = vmatpush1.xpose.msra.mxu0 0.0
        %1240 = vmatprep.subr.mxu0 0.0
        %1241 = vmatpush1.xpose.msra.mxu0 0.0
        %1242 = vmatprep.subr.mxu0 0.0
        %1243 = vmatpush1.xpose.msra.mxu0 0.0
        %1244 = vmatprep.subr.mxu0 0.0
        %1245 = vmatpush1.xpose.msra.mxu0 0.0
        %1246 = vmatprep.subr.mxu0 0.0
        %1247 = vmatpush1.xpose.msra.mxu0 0.0
        %1248 = vmatprep.subr.mxu0 0.0
        %1249 = vmatpush1.xpose.msra.mxu0 0.0
        %1250 = vmatprep.subr.mxu0 0.0
        %1251 = vmatpush1.xpose.msra.mxu0 0.0
        %1252 = vmatprep.subr.mxu0 0.0
        %1253 = vmatpush1.xpose.msra.mxu0 0.0
        %1254 = vmatprep.subr.mxu0 0.0
        %1255 = vmatpush1.xpose.msra.mxu0 0.0
        %1256 = vmatprep.subr.mxu0 0.0
        %1257 = vmatpush1.xpose.msra.mxu0 0.0
        %1258 = vmatprep.subr.mxu0 0.0
        %1259 = vmatpush1.xpose.msra.mxu0 0.0
        %1260 = vmatprep.subr.mxu0 0.0
        %1261 = vmatpush1.xpose.msra.mxu0 0.0
        %1262 = vmatprep.subr.mxu0 0.0
        %1263 = vmatpush1.xpose.msra.mxu0 0.0
        %1264 = vmatprep.subr.mxu0 0.0
        %1265 = vmatpush1.xpose.msra.mxu0 0.0
        %1266 = vmatprep.subr.mxu0 0.0
        %1267 = vmatpush1.xpose.msra.mxu0 0.0
        %1268 = vmatprep.subr.mxu0 0.0
        %1269 = vmatpush1.xpose.msra.mxu0 0.0
        %1270 = vmatprep.subr.mxu0 0.0
        %1271 = vmatpush1.xpose.msra.mxu0 0.0
        %1272 = vmatprep.mubr.f32.mxu0 0.0
        %1273 = vmatmul.mubr.f32.gmra.mrb[0].mxu0 %v1203
        %v1274 = vpop.f32.mrb[0].mxu0
        %v1275 = vadd.f32 0.0, %v1274
        %v1276 = vpop.f32.mrb[0].mxu0
        %1277 = vdwg.mxu0
        %v1279 = vsel %vm1201, %v406, 0
        %v1282 = vsel %vm1201, %v732, 0
        %1284 = vmatprep.subr.mxu0 0.0
        %1285 = vmatpush1.xpose.msra.mxu0 %v1282
        %1286 = vmatprep.subr.mxu0 0.0
        %1287 = vmatpush1.xpose.msra.mxu0 0.0
        %1288 = vmatprep.subr.mxu0 0.0
        %1289 = vmatpush1.xpose.msra.mxu0 0.0
        %1290 = vmatprep.subr.mxu0 0.0
        %1291 = vmatpush1.xpose.msra.mxu0 0.0
        %1292 = vmatprep.subr.mxu0 0.0
        %1293 = vmatpush1.xpose.msra.mxu0 0.0
        %1294 = vmatprep.subr.mxu0 0.0
        %1295 = vmatpush1.xpose.msra.mxu0 0.0
        %1296 = vmatprep.subr.mxu0 0.0
        %1297 = vmatpush1.xpose.msra.mxu0 0.0
        %1298 = vmatprep.subr.mxu0 0.0
        %1299 = vmatpush1.xpose.msra.mxu0 0.0
        %1300 = vmatprep.subr.mxu0 0.0
        %1301 = vmatpush1.xpose.msra.mxu0 0.0
        %1302 = vmatprep.subr.mxu0 0.0
        %1303 = vmatpush1.xpose.msra.mxu0 0.0
        %1304 = vmatprep.subr.mxu0 0.0
        %1305 = vmatpush1.xpose.msra.mxu0 0.0
        %1306 = vmatprep.subr.mxu0 0.0
        %1307 = vmatpush1.xpose.msra.mxu0 0.0
        %1308 = vmatprep.subr.mxu0 0.0
        %1309 = vmatpush1.xpose.msra.mxu0 0.0
        %1310 = vmatprep.subr.mxu0 0.0
        %1311 = vmatpush1.xpose.msra.mxu0 0.0
        %1312 = vmatprep.subr.mxu0 0.0
        %1313 = vmatpush1.xpose.msra.mxu0 0.0
        %1314 = vmatprep.subr.mxu0 0.0
        %1315 = vmatpush1.xpose.msra.mxu0 0.0
        %1316 = vmatprep.subr.mxu0 0.0
        %1317 = vmatpush1.xpose.msra.mxu0 0.0
        %1318 = vmatprep.subr.mxu0 0.0
        %1319 = vmatpush1.xpose.msra.mxu0 0.0
        %1320 = vmatprep.subr.mxu0 0.0
        %1321 = vmatpush1.xpose.msra.mxu0 0.0
        %1322 = vmatprep.subr.mxu0 0.0
        %1323 = vmatpush1.xpose.msra.mxu0 0.0
        %1324 = vmatprep.subr.mxu0 0.0
        %1325 = vmatpush1.xpose.msra.mxu0 0.0
        %1326 = vmatprep.subr.mxu0 0.0
        %1327 = vmatpush1.xpose.msra.mxu0 0.0
        %1328 = vmatprep.subr.mxu0 0.0
        %1329 = vmatpush1.xpose.msra.mxu0 0.0
        %1330 = vmatprep.subr.mxu0 0.0
        %1331 = vmatpush1.xpose.msra.mxu0 0.0
        %1332 = vmatprep.subr.mxu0 0.0
        %1333 = vmatpush1.xpose.msra.mxu0 0.0
        %1334 = vmatprep.subr.mxu0 0.0
        %1335 = vmatpush1.xpose.msra.mxu0 0.0
        %1336 = vmatprep.subr.mxu0 0.0
        %1337 = vmatpush1.xpose.msra.mxu0 0.0
        %1338 = vmatprep.subr.mxu0 0.0
        %1339 = vmatpush1.xpose.msra.mxu0 0.0
        %1340 = vmatprep.subr.mxu0 0.0
        %1341 = vmatpush1.xpose.msra.mxu0 0.0
        %1342 = vmatprep.subr.mxu0 0.0
        %1343 = vmatpush1.xpose.msra.mxu0 0.0
        %1344 = vmatprep.subr.mxu0 0.0
        %1345 = vmatpush1.xpose.msra.mxu0 0.0
        %1346 = vmatprep.subr.mxu0 0.0
        %1347 = vmatpush1.xpose.msra.mxu0 0.0
        %1348 = vmatprep.mubr.f32.mxu0 0.0
        %1349 = vmatmul.mubr.f32.gmra.mrb[0].mxu0 %v1279
        %v1350 = vpop.f32.mrb[0].mxu0
        %v1351 = vadd.f32 0.0, %v1350
        %v1352 = vpop.f32.mrb[0].mxu0
        %1353 = vdwg.mxu0
        %v1355 = vsel %vm1201, %v476, 0
        %v1358 = vsel %vm1201, %v802, 0
        %1360 = vmatprep.subr.mxu0 0.0
        %1361 = vmatpush1.xpose.msra.mxu0 %v1358
        %1362 = vmatprep.subr.mxu0 0.0
        %1363 = vmatpush1.xpose.msra.mxu0 0.0
        %1364 = vmatprep.subr.mxu0 0.0
        %1365 = vmatpush1.xpose.msra.mxu0 0.0
        %1366 = vmatprep.subr.mxu0 0.0
        %1367 = vmatpush1.xpose.msra.mxu0 0.0
        %1368 = vmatprep.subr.mxu0 0.0
        %1369 = vmatpush1.xpose.msra.mxu0 0.0
        %1370 = vmatprep.subr.mxu0 0.0
        %1371 = vmatpush1.xpose.msra.mxu0 0.0
        %1372 = vmatprep.subr.mxu0 0.0
        %1373 = vmatpush1.xpose.msra.mxu0 0.0
        %1374 = vmatprep.subr.mxu0 0.0
        %1375 = vmatpush1.xpose.msra.mxu0 0.0
        %1376 = vmatprep.subr.mxu0 0.0
        %1377 = vmatpush1.xpose.msra.mxu0 0.0
        %1378 = vmatprep.subr.mxu0 0.0
        %1379 = vmatpush1.xpose.msra.mxu0 0.0
        %1380 = vmatprep.subr.mxu0 0.0
        %1381 = vmatpush1.xpose.msra.mxu0 0.0
        %1382 = vmatprep.subr.mxu0 0.0
        %1383 = vmatpush1.xpose.msra.mxu0 0.0
        %1384 = vmatprep.subr.mxu0 0.0
        %1385 = vmatpush1.xpose.msra.mxu0 0.0
        %1386 = vmatprep.subr.mxu0 0.0
        %1387 = vmatpush1.xpose.msra.mxu0 0.0
        %1388 = vmatprep.subr.mxu0 0.0
        %1389 = vmatpush1.xpose.msra.mxu0 0.0
        %1390 = vmatprep.subr.mxu0 0.0
        %1391 = vmatpush1.xpose.msra.mxu0 0.0
        %1392 = vmatprep.subr.mxu0 0.0
        %1393 = vmatpush1.xpose.msra.mxu0 0.0
        %1394 = vmatprep.subr.mxu0 0.0
        %1395 = vmatpush1.xpose.msra.mxu0 0.0
        %1396 = vmatprep.subr.mxu0 0.0
        %1397 = vmatpush1.xpose.msra.mxu0 0.0
        %1398 = vmatprep.subr.mxu0 0.0
        %1399 = vmatpush1.xpose.msra.mxu0 0.0
        %1400 = vmatprep.subr.mxu0 0.0
        %1401 = vmatpush1.xpose.msra.mxu0 0.0
        %1402 = vmatprep.subr.mxu0 0.0
        %1403 = vmatpush1.xpose.msra.mxu0 0.0
        %1404 = vmatprep.subr.mxu0 0.0
        %1405 = vmatpush1.xpose.msra.mxu0 0.0
        %1406 = vmatprep.subr.mxu0 0.0
        %1407 = vmatpush1.xpose.msra.mxu0 0.0
        %1408 = vmatprep.subr.mxu0 0.0
        %1409 = vmatpush1.xpose.msra.mxu0 0.0
        %1410 = vmatprep.subr.mxu0 0.0
        %1411 = vmatpush1.xpose.msra.mxu0 0.0
        %1412 = vmatprep.subr.mxu0 0.0
        %1413 = vmatpush1.xpose.msra.mxu0 0.0
        %1414 = vmatprep.subr.mxu0 0.0
        %1415 = vmatpush1.xpose.msra.mxu0 0.0
        %1416 = vmatprep.subr.mxu0 0.0
        %1417 = vmatpush1.xpose.msra.mxu0 0.0
        %1418 = vmatprep.subr.mxu0 0.0
        %1419 = vmatpush1.xpose.msra.mxu0 0.0
        %1420 = vmatprep.subr.mxu0 0.0
        %1421 = vmatpush1.xpose.msra.mxu0 0.0
        %1422 = vmatprep.subr.mxu0 0.0
        %1423 = vmatpush1.xpose.msra.mxu0 0.0
        %1424 = vmatprep.mubr.f32.mxu0 0.0
        %1425 = vmatmul.mubr.f32.gmra.mrb[0].mxu0 %v1355
        %v1426 = vpop.f32.mrb[0].mxu0
        %v1427 = vadd.f32 0.0, %v1426
        %v1428 = vpop.f32.mrb[0].mxu0
        %1429 = vdwg.mxu0
        %v1431 = vsel %vm1201, %v546, 0
        %v1434 = vsel %vm1201, %v872, 0
        %1436 = vmatprep.subr.mxu0 0.0
        %1437 = vmatpush1.xpose.msra.mxu0 %v1434
        %1438 = vmatprep.subr.mxu0 0.0
        %1439 = vmatpush1.xpose.msra.mxu0 0.0
        %1440 = vmatprep.subr.mxu0 0.0
        %1441 = vmatpush1.xpose.msra.mxu0 0.0
        %1442 = vmatprep.subr.mxu0 0.0
        %1443 = vmatpush1.xpose.msra.mxu0 0.0
        %1444 = vmatprep.subr.mxu0 0.0
        %1445 = vmatpush1.xpose.msra.mxu0 0.0
        %1446 = vmatprep.subr.mxu0 0.0
        %1447 = vmatpush1.xpose.msra.mxu0 0.0
        %1448 = vmatprep.subr.mxu0 0.0
        %1449 = vmatpush1.xpose.msra.mxu0 0.0
        %1450 = vmatprep.subr.mxu0 0.0
        %1451 = vmatpush1.xpose.msra.mxu0 0.0
        %1452 = vmatprep.subr.mxu0 0.0
        %1453 = vmatpush1.xpose.msra.mxu0 0.0
        %1454 = vmatprep.subr.mxu0 0.0
        %1455 = vmatpush1.xpose.msra.mxu0 0.0
        %1456 = vmatprep.subr.mxu0 0.0
        %1457 = vmatpush1.xpose.msra.mxu0 0.0
        %1458 = vmatprep.subr.mxu0 0.0
        %1459 = vmatpush1.xpose.msra.mxu0 0.0
        %1460 = vmatprep.subr.mxu0 0.0
        %1461 = vmatpush1.xpose.msra.mxu0 0.0
        %1462 = vmatprep.subr.mxu0 0.0
        %1463 = vmatpush1.xpose.msra.mxu0 0.0
        %1464 = vmatprep.subr.mxu0 0.0
        %1465 = vmatpush1.xpose.msra.mxu0 0.0
        %1466 = vmatprep.subr.mxu0 0.0
        %1467 = vmatpush1.xpose.msra.mxu0 0.0
        %1468 = vmatprep.subr.mxu0 0.0
        %1469 = vmatpush1.xpose.msra.mxu0 0.0
        %1470 = vmatprep.subr.mxu0 0.0
        %1471 = vmatpush1.xpose.msra.mxu0 0.0
        %1472 = vmatprep.subr.mxu0 0.0
        %1473 = vmatpush1.xpose.msra.mxu0 0.0
        %1474 = vmatprep.subr.mxu0 0.0
        %1475 = vmatpush1.xpose.msra.mxu0 0.0
        %1476 = vmatprep.subr.mxu0 0.0
        %1477 = vmatpush1.xpose.msra.mxu0 0.0
        %1478 = vmatprep.subr.mxu0 0.0
        %1479 = vmatpush1.xpose.msra.mxu0 0.0
        %1480 = vmatprep.subr.mxu0 0.0
        %1481 = vmatpush1.xpose.msra.mxu0 0.0
        %1482 = vmatprep.subr.mxu0 0.0
        %1483 = vmatpush1.xpose.msra.mxu0 0.0
        %1484 = vmatprep.subr.mxu0 0.0
        %1485 = vmatpush1.xpose.msra.mxu0 0.0
        %1486 = vmatprep.subr.mxu0 0.0
        %1487 = vmatpush1.xpose.msra.mxu0 0.0
        %1488 = vmatprep.subr.mxu0 0.0
        %1489 = vmatpush1.xpose.msra.mxu0 0.0
        %1490 = vmatprep.subr.mxu0 0.0
        %1491 = vmatpush1.xpose.msra.mxu0 0.0
        %1492 = vmatprep.subr.mxu0 0.0
        %1493 = vmatpush1.xpose.msra.mxu0 0.0
        %1494 = vmatprep.subr.mxu0 0.0
        %1495 = vmatpush1.xpose.msra.mxu0 0.0
        %1496 = vmatprep.subr.mxu0 0.0
        %1497 = vmatpush1.xpose.msra.mxu0 0.0
        %1498 = vmatprep.subr.mxu0 0.0
        %1499 = vmatpush1.xpose.msra.mxu0 0.0
        %1500 = vmatprep.mubr.f32.mxu0 0.0
        %1501 = vmatmul.mubr.f32.gmra.mrb[0].mxu0 %v1431
        %v1502 = vpop.f32.mrb[0].mxu0
        %v1503 = vadd.f32 0.0, %v1502
        %v1504 = vpop.f32.mrb[0].mxu0
        %1505 = vdwg.mxu0
        %v1506 = vmul.f32 %v1275, 0.35355338
        %v1507 = vmul.f32 %v1351, 0.35355338
        %v1508 = vmul.f32 %v1427, 0.35355338
        %v1509 = vmul.f32 %v1503, 0.35355338
        %v1510 = vlaneseq
        %v1511 = vshrl.u32 %v1510, 7
        %v1512 = vlaneseq
        %v1513 = vand.u32 %v1512, 127
        %vm1514 = vcmp.ge.s32.totalorder %v1511, %v1513
        %v1515 = vsel %vm1514, 1, 0
        %vm1516 = vcmp.eq.s32.totalorder %v1515, 1
        %v1517 = vsel %vm1516, %v1506, -3.4028235e+38
        %v1518 = vsel %vm1516, %v1507, -3.4028235e+38
        %v1519 = vsel %vm1516, %v1508, -3.4028235e+38
        %v1520 = vsel %vm1516, %v1509, -3.4028235e+38
        %v1521 = vsel %vm1201, %v1517, -inf
        %1522 = vmax.xlane.f32.xlu0 %v1521
        %v1523 = vpop.xlane.xlu0 %1522
        %v1524 = vsel %vm1201, %v1518, -inf
        %1525 = vmax.xlane.f32.xlu0 %v1524
        %v1526 = vpop.xlane.xlu0 %1525
        %v1527 = vsel %vm1201, %v1519, -inf
        %1528 = vmax.xlane.f32.xlu0 %v1527
        %v1529 = vpop.xlane.xlu0 %1528
        %v1530 = vsel %vm1201, %v1520, -inf
        %1531 = vmax.xlane.f32.xlu0 %v1530
        %v1532 = vpop.xlane.xlu0 %1531
        %v1533 = vsub.f32 %v1517, %v1523
        %v1534 = vsub.f32 %v1518, %v1526
        %v1535 = vsub.f32 %v1519, %v1529
        %v1536 = vsub.f32 %v1520, %v1532
        %v1537 = vmul.f32 %v1533, 1.442695
        %v1538 = vpow.pop %v1537
        %v1539 = vmul.f32 %v1534, 1.442695
        %v1540 = vpow.pop %v1539
        %v1541 = vmul.f32 %v1535, 1.442695
        %v1542 = vpow.pop %v1541
        %v1543 = vmul.f32 %v1536, 1.442695
        %v1544 = vpow.pop %v1543
        %v1545 = vsel %vm1201, %v1538, 0.0
        %1546 = vadd.xlane.f32.xlu0 %v1545
        %v1547 = vpop.xlane.xlu0 %1546
        %v1548 = vsel %vm1201, %v1540, 0.0
        %1549 = vadd.xlane.f32.xlu0 %v1548
        %v1550 = vpop.xlane.xlu0 %1549
        %v1551 = vsel %vm1201, %v1542, 0.0
        %1552 = vadd.xlane.f32.xlu0 %v1551
        %v1553 = vpop.xlane.xlu0 %1552
        %v1554 = vsel %vm1201, %v1544, 0.0
        %1555 = vadd.xlane.f32.xlu0 %v1554
        %v1556 = vpop.xlane.xlu0 %1555
        %v1557 = vrcp.pop %v1547
        %v1558 = vmul.f32 %v1538, %v1557
        %v1559 = vrcp.pop %v1550
        %v1560 = vmul.f32 %v1540, %v1559
        %v1561 = vrcp.pop %v1553
        %v1562 = vmul.f32 %v1542, %v1561
        %v1563 = vrcp.pop %v1556
        %v1564 = vmul.f32 %v1544, %v1563
        %v1566 = vsel %vm1201, %v1558, 0
        %1568 = vmatprep.subr.mxu0 0.0
        %1569 = vmatpush1.msra.mxu0 %v988
        %1570 = vmatprep.subr.mxu0 0.0
        %1571 = vmatpush1.msra.mxu0 0.0
        %1572 = vmatprep.subr.mxu0 0.0
        %1573 = vmatpush1.msra.mxu0 0.0
        %1574 = vmatprep.subr.mxu0 0.0
        %1575 = vmatpush1.msra.mxu0 0.0
        %1576 = vmatprep.subr.mxu0 0.0
        %1577 = vmatpush1.msra.mxu0 0.0
        %1578 = vmatprep.subr.mxu0 0.0
        %1579 = vmatpush1.msra.mxu0 0.0
        %1580 = vmatprep.subr.mxu0 0.0
        %1581 = vmatpush1.msra.mxu0 0.0
        %1582 = vmatprep.subr.mxu0 0.0
        %1583 = vmatpush1.msra.mxu0 0.0
        %1584 = vmatprep.subr.mxu0 0.0
        %1585 = vmatpush1.msra.mxu0 0.0
        %1586 = vmatprep.subr.mxu0 0.0
        %1587 = vmatpush1.msra.mxu0 0.0
        %1588 = vmatprep.subr.mxu0 0.0
        %1589 = vmatpush1.msra.mxu0 0.0
        %1590 = vmatprep.subr.mxu0 0.0
        %1591 = vmatpush1.msra.mxu0 0.0
        %1592 = vmatprep.subr.mxu0 0.0
        %1593 = vmatpush1.msra.mxu0 0.0
        %1594 = vmatprep.subr.mxu0 0.0
        %1595 = vmatpush1.msra.mxu0 0.0
        %1596 = vmatprep.subr.mxu0 0.0
        %1597 = vmatpush1.msra.mxu0 0.0
        %1598 = vmatprep.subr.mxu0 0.0
        %1599 = vmatpush1.msra.mxu0 0.0
        %1600 = vmatprep.subr.mxu0 0.0
        %1601 = vmatpush1.msra.mxu0 0.0
        %1602 = vmatprep.subr.mxu0 0.0
        %1603 = vmatpush1.msra.mxu0 0.0
        %1604 = vmatprep.subr.mxu0 0.0
        %1605 = vmatpush1.msra.mxu0 0.0
        %1606 = vmatprep.subr.mxu0 0.0
        %1607 = vmatpush1.msra.mxu0 0.0
        %1608 = vmatprep.subr.mxu0 0.0
        %1609 = vmatpush1.msra.mxu0 0.0
        %1610 = vmatprep.subr.mxu0 0.0
        %1611 = vmatpush1.msra.mxu0 0.0
        %1612 = vmatprep.subr.mxu0 0.0
        %1613 = vmatpush1.msra.mxu0 0.0
        %1614 = vmatprep.subr.mxu0 0.0
        %1615 = vmatpush1.msra.mxu0 0.0
        %1616 = vmatprep.subr.mxu0 0.0
        %1617 = vmatpush1.msra.mxu0 0.0
        %1618 = vmatprep.subr.mxu0 0.0
        %1619 = vmatpush1.msra.mxu0 0.0
        %1620 = vmatprep.subr.mxu0 0.0
        %1621 = vmatpush1.msra.mxu0 0.0
        %1622 = vmatprep.subr.mxu0 0.0
        %1623 = vmatpush1.msra.mxu0 0.0
        %1624 = vmatprep.subr.mxu0 0.0
        %1625 = vmatpush1.msra.mxu0 0.0
        %1626 = vmatprep.subr.mxu0 0.0
        %1627 = vmatpush1.msra.mxu0 0.0
        %1628 = vmatprep.subr.mxu0 0.0
        %1629 = vmatpush1.msra.mxu0 0.0
        %1630 = vmatprep.subr.mxu0 0.0
        %1631 = vmatpush1.msra.mxu0 0.0
        %1632 = vmatprep.mubr.f32.mxu0 0.0
        %1633 = vmatmul.mubr.f32.gmra.mrb[0].mxu0 %v1566
        %v1634 = vpop.f32.mrb[0].mxu0
        %v1635 = vadd.f32 0.0, %v1634
        %v1636 = vpop.f32.mrb[0].mxu0
        %1637 = vdwg.mxu0
        %v1639 = vsel %vm1201, %v1560, 0
        %1641 = vmatprep.subr.mxu0 0.0
        %1642 = vmatpush1.msra.mxu0 %v1058
        %1643 = vmatprep.subr.mxu0 0.0
        %1644 = vmatpush1.msra.mxu0 0.0
        %1645 = vmatprep.subr.mxu0 0.0
        %1646 = vmatpush1.msra.mxu0 0.0
        %1647 = vmatprep.subr.mxu0 0.0
        %1648 = vmatpush1.msra.mxu0 0.0
        %1649 = vmatprep.subr.mxu0 0.0
        %1650 = vmatpush1.msra.mxu0 0.0
        %1651 = vmatprep.subr.mxu0 0.0
        %1652 = vmatpush1.msra.mxu0 0.0
        %1653 = vmatprep.subr.mxu0 0.0
        %1654 = vmatpush1.msra.mxu0 0.0
        %1655 = vmatprep.subr.mxu0 0.0
        %1656 = vmatpush1.msra.mxu0 0.0
        %1657 = vmatprep.subr.mxu0 0.0
        %1658 = vmatpush1.msra.mxu0 0.0
        %1659 = vmatprep.subr.mxu0 0.0
        %1660 = vmatpush1.msra.mxu0 0.0
        %1661 = vmatprep.subr.mxu0 0.0
        %1662 = vmatpush1.msra.mxu0 0.0
        %1663 = vmatprep.subr.mxu0 0.0
        %1664 = vmatpush1.msra.mxu0 0.0
        %1665 = vmatprep.subr.mxu0 0.0
        %1666 = vmatpush1.msra.mxu0 0.0
        %1667 = vmatprep.subr.mxu0 0.0
        %1668 = vmatpush1.msra.mxu0 0.0
        %1669 = vmatprep.subr.mxu0 0.0
        %1670 = vmatpush1.msra.mxu0 0.0
        %1671 = vmatprep.subr.mxu0 0.0
        %1672 = vmatpush1.msra.mxu0 0.0
        %1673 = vmatprep.subr.mxu0 0.0
        %1674 = vmatpush1.msra.mxu0 0.0
        %1675 = vmatprep.subr.mxu0 0.0
        %1676 = vmatpush1.msra.mxu0 0.0
        %1677 = vmatprep.subr.mxu0 0.0
        %1678 = vmatpush1.msra.mxu0 0.0
        %1679 = vmatprep.subr.mxu0 0.0
        %1680 = vmatpush1.msra.mxu0 0.0
        %1681 = vmatprep.subr.mxu0 0.0
        %1682 = vmatpush1.msra.mxu0 0.0
        %1683 = vmatprep.subr.mxu0 0.0
        %1684 = vmatpush1.msra.mxu0 0.0
        %1685 = vmatprep.subr.mxu0 0.0
        %1686 = vmatpush1.msra.mxu0 0.0
        %1687 = vmatprep.subr.mxu0 0.0
        %1688 = vmatpush1.msra.mxu0 0.0
        %1689 = vmatprep.subr.mxu0 0.0
        %1690 = vmatpush1.msra.mxu0 0.0
        %1691 = vmatprep.subr.mxu0 0.0
        %1692 = vmatpush1.msra.mxu0 0.0
        %1693 = vmatprep.subr.mxu0 0.0
        %1694 = vmatpush1.msra.mxu0 0.0
        %1695 = vmatprep.subr.mxu0 0.0
        %1696 = vmatpush1.msra.mxu0 0.0
        %1697 = vmatprep.subr.mxu0 0.0
        %1698 = vmatpush1.msra.mxu0 0.0
        %1699 = vmatprep.subr.mxu0 0.0
        %1700 = vmatpush1.msra.mxu0 0.0
        %1701 = vmatprep.subr.mxu0 0.0
        %1702 = vmatpush1.msra.mxu0 0.0
        %1703 = vmatprep.subr.mxu0 0.0
        %1704 = vmatpush1.msra.mxu0 0.0
        %1705 = vmatprep.mubr.f32.mxu0 0.0
        %1706 = vmatmul.mubr.f32.gmra.mrb[0].mxu0 %v1639
        %v1707 = vpop.f32.mrb[0].mxu0
        %v1708 = vadd.f32 0.0, %v1707
        %v1709 = vpop.f32.mrb[0].mxu0
        %1710 = vdwg.mxu0
        %v1712 = vsel %vm1201, %v1562, 0
        %1714 = vmatprep.subr.mxu0 0.0
        %1715 = vmatpush1.msra.mxu0 %v1128
        %1716 = vmatprep.subr.mxu0 0.0
        %1717 = vmatpush1.msra.mxu0 0.0
        %1718 = vmatprep.subr.mxu0 0.0
        %1719 = vmatpush1.msra.mxu0 0.0
        %1720 = vmatprep.subr.mxu0 0.0
        %1721 = vmatpush1.msra.mxu0 0.0
        %1722 = vmatprep.subr.mxu0 0.0
        %1723 = vmatpush1.msra.mxu0 0.0
        %1724 = vmatprep.subr.mxu0 0.0
        %1725 = vmatpush1.msra.mxu0 0.0
        %1726 = vmatprep.subr.mxu0 0.0
        %1727 = vmatpush1.msra.mxu0 0.0
        %1728 = vmatprep.subr.mxu0 0.0
        %1729 = vmatpush1.msra.mxu0 0.0
        %1730 = vmatprep.subr.mxu0 0.0
        %1731 = vmatpush1.msra.mxu0 0.0
        %1732 = vmatprep.subr.mxu0 0.0
        %1733 = vmatpush1.msra.mxu0 0.0
        %1734 = vmatprep.subr.mxu0 0.0
        %1735 = vmatpush1.msra.mxu0 0.0
        %1736 = vmatprep.subr.mxu0 0.0
        %1737 = vmatpush1.msra.mxu0 0.0
        %1738 = vmatprep.subr.mxu0 0.0
        %1739 = vmatpush1.msra.mxu0 0.0
        %1740 = vmatprep.subr.mxu0 0.0
        %1741 = vmatpush1.msra.mxu0 0.0
        %1742 = vmatprep.subr.mxu0 0.0
        %1743 = vmatpush1.msra.mxu0 0.0
        %1744 = vmatprep.subr.mxu0 0.0
        %1745 = vmatpush1.msra.mxu0 0.0
        %1746 = vmatprep.subr.mxu0 0.0
        %1747 = vmatpush1.msra.mxu0 0.0
        %1748 = vmatprep.subr.mxu0 0.0
        %1749 = vmatpush1.msra.mxu0 0.0
        %1750 = vmatprep.subr.mxu0 0.0
        %1751 = vmatpush1.msra.mxu0 0.0
        %1752 = vmatprep.subr.mxu0 0.0
        %1753 = vmatpush1.msra.mxu0 0.0
        %1754 = vmatprep.subr.mxu0 0.0
        %1755 = vmatpush1.msra.mxu0 0.0
        %1756 = vmatprep.subr.mxu0 0.0
        %1757 = vmatpush1.msra.mxu0 0.0
        %1758 = vmatprep.subr.mxu0 0.0
        %1759 = vmatpush1.msra.mxu0 0.0
        %1760 = vmatprep.subr.mxu0 0.0
        %1761 = vmatpush1.msra.mxu0 0.0
        %1762 = vmatprep.subr.mxu0 0.0
        %1763 = vmatpush1.msra.mxu0 0.0
        %1764 = vmatprep.subr.mxu0 0.0
        %1765 = vmatpush1.msra.mxu0 0.0
        %1766 = vmatprep.subr.mxu0 0.0
        %1767 = vmatpush1.msra.mxu0 0.0
        %1768 = vmatprep.subr.mxu0 0.0
        %1769 = vmatpush1.msra.mxu0 0.0
        %1770 = vmatprep.subr.mxu0 0.0
        %1771 = vmatpush1.msra.mxu0 0.0
        %1772 = vmatprep.subr.mxu0 0.0
        %1773 = vmatpush1.msra.mxu0 0.0
        %1774 = vmatprep.subr.mxu0 0.0
        %1775 = vmatpush1.msra.mxu0 0.0
        %1776 = vmatprep.subr.mxu0 0.0
        %1777 = vmatpush1.msra.mxu0 0.0
        %1778 = vmatprep.mubr.f32.mxu0 0.0
        %1779 = vmatmul.mubr.f32.gmra.mrb[0].mxu0 %v1712
        %v1780 = vpop.f32.mrb[0].mxu0
        %v1781 = vadd.f32 0.0, %v1780
        %v1782 = vpop.f32.mrb[0].mxu0
        %1783 = vdwg.mxu0
        %v1785 = vsel %vm1201, %v1564, 0
        %1787 = vmatprep.subr.mxu0 0.0
        %1788 = vmatpush1.msra.mxu0 %v1198
        %1789 = vmatprep.subr.mxu0 0.0
        %1790 = vmatpush1.msra.mxu0 0.0
        %1791 = vmatprep.subr.mxu0 0.0
        %1792 = vmatpush1.msra.mxu0 0.0
        %1793 = vmatprep.subr.mxu0 0.0
        %1794 = vmatpush1.msra.mxu0 0.0
        %1795 = vmatprep.subr.mxu0 0.0
        %1796 = vmatpush1.msra.mxu0 0.0
        %1797 = vmatprep.subr.mxu0 0.0
        %1798 = vmatpush1.msra.mxu0 0.0
        %1799 = vmatprep.subr.mxu0 0.0
        %1800 = vmatpush1.msra.mxu0 0.0
        %1801 = vmatprep.subr.mxu0 0.0
        %1802 = vmatpush1.msra.mxu0 0.0
        %1803 = vmatprep.subr.mxu0 0.0
        %1804 = vmatpush1.msra.mxu0 0.0
        %1805 = vmatprep.subr.mxu0 0.0
        %1806 = vmatpush1.msra.mxu0 0.0
        %1807 = vmatprep.subr.mxu0 0.0
        %1808 = vmatpush1.msra.mxu0 0.0
        %1809 = vmatprep.subr.mxu0 0.0
        %1810 = vmatpush1.msra.mxu0 0.0
        %1811 = vmatprep.subr.mxu0 0.0
        %1812 = vmatpush1.msra.mxu0 0.0
        %1813 = vmatprep.subr.mxu0 0.0
        %1814 = vmatpush1.msra.mxu0 0.0
        %1815 = vmatprep.subr.mxu0 0.0
        %1816 = vmatpush1.msra.mxu0 0.0
        %1817 = vmatprep.subr.mxu0 0.0
        %1818 = vmatpush1.msra.mxu0 0.0
        %1819 = vmatprep.subr.mxu0 0.0
        %1820 = vmatpush1.msra.mxu0 0.0
        %1821 = vmatprep.subr.mxu0 0.0
        %1822 = vmatpush1.msra.mxu0 0.0
        %1823 = vmatprep.subr.mxu0 0.0
        %1824 = vmatpush1.msra.mxu0 0.0
        %1825 = vmatprep.subr.mxu0 0.0
        %1826 = vmatpush1.msra.mxu0 0.0
        %1827 = vmatprep.subr.mxu0 0.0
        %1828 = vmatpush1.msra.mxu0 0.0
        %1829 = vmatprep.subr.mxu0 0.0
        %1830 = vmatpush1.msra.mxu0 0.0
        %1831 = vmatprep.subr.mxu0 0.0
        %1832 = vmatpush1.msra.mxu0 0.0
        %1833 = vmatprep.subr.mxu0 0.0
        %1834 = vmatpush1.msra.mxu0 0.0
        %1835 = vmatprep.subr.mxu0 0.0
        %1836 = vmatpush1.msra.mxu0 0.0
        %1837 = vmatprep.subr.mxu0 0.0
        %1838 = vmatpush1.msra.mxu0 0.0
        %1839 = vmatprep.subr.mxu0 0.0
        %1840 = vmatpush1.msra.mxu0 0.0
        %1841 = vmatprep.subr.mxu0 0.0
        %1842 = vmatpush1.msra.mxu0 0.0
        %1843 = vmatprep.subr.mxu0 0.0
        %1844 = vmatpush1.msra.mxu0 0.0
        %1845 = vmatprep.subr.mxu0 0.0
        %1846 = vmatpush1.msra.mxu0 0.0
        %1847 = vmatprep.subr.mxu0 0.0
        %1848 = vmatpush1.msra.mxu0 0.0
        %1849 = vmatprep.subr.mxu0 0.0
        %1850 = vmatpush1.msra.mxu0 0.0
        %1851 = vmatprep.mubr.f32.mxu0 0.0
        %1852 = vmatmul.mubr.f32.gmra.mrb[0].mxu0 %v1785
        %v1853 = vpop.f32.mrb[0].mxu0
        %v1854 = vadd.f32 0.0, %v1853
        %v1855 = vpop.f32.mrb[0].mxu0
        %1856 = vdwg.mxu0
        %v1857 = vld [vmem:[%s3] sm:$0xff]
        %v1858 = vld [vmem:[%s3 + $0x8] sm:$0xff]
        %v1859 = vld [vmem:[%s3 + $0x10] sm:$0xff]
        %v1860 = vld [vmem:[%s3 + $0x18] sm:$0xff]
        %v1862 = vsel %vm1201, %v1635, 0
        %1864 = vmatprep.subr.mxu0 0.0
        %1865 = vmatpush1.msra.mxu0 %v1857
        %1866 = vmatprep.subr.mxu0 0.0
        %1867 = vmatpush1.msra.mxu0 0.0
        %1868 = vmatprep.subr.mxu0 0.0
        %1869 = vmatpush1.msra.mxu0 0.0
        %1870 = vmatprep.subr.mxu0 0.0
        %1871 = vmatpush1.msra.mxu0 0.0
        %1872 = vmatprep.subr.mxu0 0.0
        %1873 = vmatpush1.msra.mxu0 0.0
        %1874 = vmatprep.subr.mxu0 0.0
        %1875 = vmatpush1.msra.mxu0 0.0
        %1876 = vmatprep.subr.mxu0 0.0
        %1877 = vmatpush1.msra.mxu0 0.0
        %1878 = vmatprep.subr.mxu0 0.0
        %1879 = vmatpush1.msra.mxu0 0.0
        %1880 = vmatprep.subr.mxu0 0.0
        %1881 = vmatpush1.msra.mxu0 0.0
        %1882 = vmatprep.subr.mxu0 0.0
        %1883 = vmatpush1.msra.mxu0 0.0
        %1884 = vmatprep.subr.mxu0 0.0
        %1885 = vmatpush1.msra.mxu0 0.0
        %1886 = vmatprep.subr.mxu0 0.0
        %1887 = vmatpush1.msra.mxu0 0.0
        %1888 = vmatprep.subr.mxu0 0.0
        %1889 = vmatpush1.msra.mxu0 0.0
        %1890 = vmatprep.subr.mxu0 0.0
        %1891 = vmatpush1.msra.mxu0 0.0
        %1892 = vmatprep.subr.mxu0 0.0
        %1893 = vmatpush1.msra.mxu0 0.0
        %1894 = vmatprep.subr.mxu0 0.0
        %1895 = vmatpush1.msra.mxu0 0.0
        %1896 = vmatprep.subr.mxu0 0.0
        %1897 = vmatpush1.msra.mxu0 0.0
        %1898 = vmatprep.subr.mxu0 0.0
        %1899 = vmatpush1.msra.mxu0 0.0
        %1900 = vmatprep.subr.mxu0 0.0
        %1901 = vmatpush1.msra.mxu0 0.0
        %1902 = vmatprep.subr.mxu0 0.0
        %1903 = vmatpush1.msra.mxu0 0.0
        %1904 = vmatprep.subr.mxu0 0.0
        %1905 = vmatpush1.msra.mxu0 0.0
        %1906 = vmatprep.subr.mxu0 0.0
        %1907 = vmatpush1.msra.mxu0 0.0
        %1908 = vmatprep.subr.mxu0 0.0
        %1909 = vmatpush1.msra.mxu0 0.0
        %1910 = vmatprep.subr.mxu0 0.0
        %1911 = vmatpush1.msra.mxu0 0.0
        %1912 = vmatprep.subr.mxu0 0.0
        %1913 = vmatpush1.msra.mxu0 0.0
        %1914 = vmatprep.subr.mxu0 0.0
        %1915 = vmatpush1.msra.mxu0 0.0
        %1916 = vmatprep.subr.mxu0 0.0
        %1917 = vmatpush1.msra.mxu0 0.0
        %1918 = vmatprep.subr.mxu0 0.0
        %1919 = vmatpush1.msra.mxu0 0.0
        %1920 = vmatprep.subr.mxu0 0.0
        %1921 = vmatpush1.msra.mxu0 0.0
        %1922 = vmatprep.subr.mxu0 0.0
        %1923 = vmatpush1.msra.mxu0 0.0
        %1924 = vmatprep.subr.mxu0 0.0
        %1925 = vmatpush1.msra.mxu0 0.0
        %1926 = vmatprep.subr.mxu0 0.0
        %1927 = vmatpush1.msra.mxu0 0.0
        %1928 = vmatprep.mubr.f32.mxu0 0.0
        %1929 = vmatmul.mubr.f32.gmra.mrb[0].mxu0 %v1862
        %v1930 = vpop.f32.mrb[0].mxu0
        %v1931 = vadd.f32 0.0, %v1930
        %v1932 = vpop.f32.mrb[0].mxu0
        %1933 = vdwg.mxu0
        %v1935 = vsel %vm1201, %v1708, 0
        %1937 = vmatprep.subr.mxu0 0.0
        %1938 = vmatpush1.msra.mxu0 %v1858
        %1939 = vmatprep.subr.mxu0 0.0
        %1940 = vmatpush1.msra.mxu0 0.0
        %1941 = vmatprep.subr.mxu0 0.0
        %1942 = vmatpush1.msra.mxu0 0.0
        %1943 = vmatprep.subr.mxu0 0.0
        %1944 = vmatpush1.msra.mxu0 0.0
        %1945 = vmatprep.subr.mxu0 0.0
        %1946 = vmatpush1.msra.mxu0 0.0
        %1947 = vmatprep.subr.mxu0 0.0
        %1948 = vmatpush1.msra.mxu0 0.0
        %1949 = vmatprep.subr.mxu0 0.0
        %1950 = vmatpush1.msra.mxu0 0.0
        %1951 = vmatprep.subr.mxu0 0.0
        %1952 = vmatpush1.msra.mxu0 0.0
        %1953 = vmatprep.subr.mxu0 0.0
        %1954 = vmatpush1.msra.mxu0 0.0
        %1955 = vmatprep.subr.mxu0 0.0
        %1956 = vmatpush1.msra.mxu0 0.0
        %1957 = vmatprep.subr.mxu0 0.0
        %1958 = vmatpush1.msra.mxu0 0.0
        %1959 = vmatprep.subr.mxu0 0.0
        %1960 = vmatpush1.msra.mxu0 0.0
        %1961 = vmatprep.subr.mxu0 0.0
        %1962 = vmatpush1.msra.mxu0 0.0
        %1963 = vmatprep.subr.mxu0 0.0
        %1964 = vmatpush1.msra.mxu0 0.0
        %1965 = vmatprep.subr.mxu0 0.0
        %1966 = vmatpush1.msra.mxu0 0.0
        %1967 = vmatprep.subr.mxu0 0.0
        %1968 = vmatpush1.msra.mxu0 0.0
        %1969 = vmatprep.subr.mxu0 0.0
        %1970 = vmatpush1.msra.mxu0 0.0
        %1971 = vmatprep.subr.mxu0 0.0
        %1972 = vmatpush1.msra.mxu0 0.0
        %1973 = vmatprep.subr.mxu0 0.0
        %1974 = vmatpush1.msra.mxu0 0.0
        %1975 = vmatprep.subr.mxu0 0.0
        %1976 = vmatpush1.msra.mxu0 0.0
        %1977 = vmatprep.subr.mxu0 0.0
        %1978 = vmatpush1.msra.mxu0 0.0
        %1979 = vmatprep.subr.mxu0 0.0
        %1980 = vmatpush1.msra.mxu0 0.0
        %1981 = vmatprep.subr.mxu0 0.0
        %1982 = vmatpush1.msra.mxu0 0.0
        %1983 = vmatprep.subr.mxu0 0.0
        %1984 = vmatpush1.msra.mxu0 0.0
        %1985 = vmatprep.subr.mxu0 0.0
        %1986 = vmatpush1.msra.mxu0 0.0
        %1987 = vmatprep.subr.mxu0 0.0
        %1988 = vmatpush1.msra.mxu0 0.0
        %1989 = vmatprep.subr.mxu0 0.0
        %1990 = vmatpush1.msra.mxu0 0.0
        %1991 = vmatprep.subr.mxu0 0.0
        %1992 = vmatpush1.msra.mxu0 0.0
        %1993 = vmatprep.subr.mxu0 0.0
        %1994 = vmatpush1.msra.mxu0 0.0
        %1995 = vmatprep.subr.mxu0 0.0
        %1996 = vmatpush1.msra.mxu0 0.0
        %1997 = vmatprep.subr.mxu0 0.0
        %1998 = vmatpush1.msra.mxu0 0.0
        %1999 = vmatprep.subr.mxu0 0.0
        %2000 = vmatpush1.msra.mxu0 0.0
        %2001 = vmatprep.mubr.f32.mxu0 0.0
        %2002 = vmatmul.mubr.f32.gmra.mrb[0].mxu0 %v1935
        %v2003 = vpop.f32.mrb[0].mxu0
        %v2004 = vadd.f32 0.0, %v2003
        %v2005 = vpop.f32.mrb[0].mxu0
        %2006 = vdwg.mxu0
        %v2008 = vsel %vm1201, %v1781, 0
        %2010 = vmatprep.subr.mxu0 0.0
        %2011 = vmatpush1.msra.mxu0 %v1859
        %2012 = vmatprep.subr.mxu0 0.0
        %2013 = vmatpush1.msra.mxu0 0.0
        %2014 = vmatprep.subr.mxu0 0.0
        %2015 = vmatpush1.msra.mxu0 0.0
        %2016 = vmatprep.subr.mxu0 0.0
        %2017 = vmatpush1.msra.mxu0 0.0
        %2018 = vmatprep.subr.mxu0 0.0
        %2019 = vmatpush1.msra.mxu0 0.0
        %2020 = vmatprep.subr.mxu0 0.0
        %2021 = vmatpush1.msra.mxu0 0.0
        %2022 = vmatprep.subr.mxu0 0.0
        %2023 = vmatpush1.msra.mxu0 0.0
        %2024 = vmatprep.subr.mxu0 0.0
        %2025 = vmatpush1.msra.mxu0 0.0
        %2026 = vmatprep.subr.mxu0 0.0
        %2027 = vmatpush1.msra.mxu0 0.0
        %2028 = vmatprep.subr.mxu0 0.0
        %2029 = vmatpush1.msra.mxu0 0.0
        %2030 = vmatprep.subr.mxu0 0.0
        %2031 = vmatpush1.msra.mxu0 0.0
        %2032 = vmatprep.subr.mxu0 0.0
        %2033 = vmatpush1.msra.mxu0 0.0
        %2034 = vmatprep.subr.mxu0 0.0
        %2035 = vmatpush1.msra.mxu0 0.0
        %2036 = vmatprep.subr.mxu0 0.0
        %2037 = vmatpush1.msra.mxu0 0.0
        %2038 = vmatprep.subr.mxu0 0.0
        %2039 = vmatpush1.msra.mxu0 0.0
        %2040 = vmatprep.subr.mxu0 0.0
        %2041 = vmatpush1.msra.mxu0 0.0
        %2042 = vmatprep.subr.mxu0 0.0
        %2043 = vmatpush1.msra.mxu0 0.0
        %2044 = vmatprep.subr.mxu0 0.0
        %2045 = vmatpush1.msra.mxu0 0.0
        %2046 = vmatprep.subr.mxu0 0.0
        %2047 = vmatpush1.msra.mxu0 0.0
        %2048 = vmatprep.subr.mxu0 0.0
        %2049 = vmatpush1.msra.mxu0 0.0
        %2050 = vmatprep.subr.mxu0 0.0
        %2051 = vmatpush1.msra.mxu0 0.0
        %2052 = vmatprep.subr.mxu0 0.0
        %2053 = vmatpush1.msra.mxu0 0.0
        %2054 = vmatprep.subr.mxu0 0.0
        %2055 = vmatpush1.msra.mxu0 0.0
        %2056 = vmatprep.subr.mxu0 0.0
        %2057 = vmatpush1.msra.mxu0 0.0
        %2058 = vmatprep.subr.mxu0 0.0
        %2059 = vmatpush1.msra.mxu0 0.0
        %2060 = vmatprep.subr.mxu0 0.0
        %2061 = vmatpush1.msra.mxu0 0.0
        %2062 = vmatprep.subr.mxu0 0.0
        %2063 = vmatpush1.msra.mxu0 0.0
        %2064 = vmatprep.subr.mxu0 0.0
        %2065 = vmatpush1.msra.mxu0 0.0
        %2066 = vmatprep.subr.mxu0 0.0
        %2067 = vmatpush1.msra.mxu0 0.0
        %2068 = vmatprep.subr.mxu0 0.0
        %2069 = vmatpush1.msra.mxu0 0.0
        %2070 = vmatprep.subr.mxu0 0.0
        %2071 = vmatpush1.msra.mxu0 0.0
        %2072 = vmatprep.subr.mxu0 0.0
        %2073 = vmatpush1.msra.mxu0 0.0
        %2074 = vmatprep.mubr.f32.mxu0 0.0
        %2075 = vmatmul.mubr.f32.gmra.mrb[0].mxu0 %v2008
        %v2076 = vpop.f32.mrb[0].mxu0
        %v2077 = vadd.f32 0.0, %v2076
        %v2078 = vpop.f32.mrb[0].mxu0
        %2079 = vdwg.mxu0
        %v2081 = vsel %vm1201, %v1854, 0
        %2083 = vmatprep.subr.mxu0 0.0
        %2084 = vmatpush1.msra.mxu0 %v1860
        %2085 = vmatprep.subr.mxu0 0.0
        %2086 = vmatpush1.msra.mxu0 0.0
        %2087 = vmatprep.subr.mxu0 0.0
        %2088 = vmatpush1.msra.mxu0 0.0
        %2089 = vmatprep.subr.mxu0 0.0
        %2090 = vmatpush1.msra.mxu0 0.0
        %2091 = vmatprep.subr.mxu0 0.0
        %2092 = vmatpush1.msra.mxu0 0.0
        %2093 = vmatprep.subr.mxu0 0.0
        %2094 = vmatpush1.msra.mxu0 0.0
        %2095 = vmatprep.subr.mxu0 0.0
        %2096 = vmatpush1.msra.mxu0 0.0
        %2097 = vmatprep.subr.mxu0 0.0
        %2098 = vmatpush1.msra.mxu0 0.0
        %2099 = vmatprep.subr.mxu0 0.0
        %2100 = vmatpush1.msra.mxu0 0.0
        %2101 = vmatprep.subr.mxu0 0.0
        %2102 = vmatpush1.msra.mxu0 0.0
        %2103 = vmatprep.subr.mxu0 0.0
        %2104 = vmatpush1.msra.mxu0 0.0
        %2105 = vmatprep.subr.mxu0 0.0
        %2106 = vmatpush1.msra.mxu0 0.0
        %2107 = vmatprep.subr.mxu0 0.0
        %2108 = vmatpush1.msra.mxu0 0.0
        %2109 = vmatprep.subr.mxu0 0.0
        %2110 = vmatpush1.msra.mxu0 0.0
        %2111 = vmatprep.subr.mxu0 0.0
        %2112 = vmatpush1.msra.mxu0 0.0
        %2113 = vmatprep.subr.mxu0 0.0
        %2114 = vmatpush1.msra.mxu0 0.0
        %2115 = vmatprep.subr.mxu0 0.0
        %2116 = vmatpush1.msra.mxu0 0.0
        %2117 = vmatprep.subr.mxu0 0.0
        %2118 = vmatpush1.msra.mxu0 0.0
        %2119 = vmatprep.subr.mxu0 0.0
        %2120 = vmatpush1.msra.mxu0 0.0
        %2121 = vmatprep.subr.mxu0 0.0
        %2122 = vmatpush1.msra.mxu0 0.0
        %2123 = vmatprep.subr.mxu0 0.0
        %2124 = vmatpush1.msra.mxu0 0.0
        %2125 = vmatprep.subr.mxu0 0.0
        %2126 = vmatpush1.msra.mxu0 0.0
        %2127 = vmatprep.subr.mxu0 0.0
        %2128 = vmatpush1.msra.mxu0 0.0
        %2129 = vmatprep.subr.mxu0 0.0
        %2130 = vmatpush1.msra.mxu0 0.0
        %2131 = vmatprep.subr.mxu0 0.0
        %2132 = vmatpush1.msra.mxu0 0.0
        %2133 = vmatprep.subr.mxu0 0.0
        %2134 = vmatpush1.msra.mxu0 0.0
        %2135 = vmatprep.subr.mxu0 0.0
        %2136 = vmatpush1.msra.mxu0 0.0
        %2137 = vmatprep.subr.mxu0 0.0
        %2138 = vmatpush1.msra.mxu0 0.0
        %2139 = vmatprep.subr.mxu0 0.0
        %2140 = vmatpush1.msra.mxu0 0.0
        %2141 = vmatprep.subr.mxu0 0.0
        %2142 = vmatpush1.msra.mxu0 0.0
        %2143 = vmatprep.subr.mxu0 0.0
        %2144 = vmatpush1.msra.mxu0 0.0
        %2145 = vmatprep.subr.mxu0 0.0
        %2146 = vmatpush1.msra.mxu0 0.0
        %2147 = vmatprep.mubr.f32.mxu0 0.0
        %2148 = vmatmul.mubr.f32.gmra.mrb[0].mxu0 %v2081
        %v2149 = vpop.f32.mrb[0].mxu0
        %v2150 = vadd.f32 0.0, %v2149
        %v2151 = vpop.f32.mrb[0].mxu0
        %2152 = vdwg.mxu0
        %v2153 = vsel %vm265, %v1931, 0.0
        %v2154 = vsel %vm265, %v2004, 0.0
        %v2155 = vadd.f32 %v2153, %v2154
        %v2156 = vsel %vm265, %v2077, 0.0
        %v2157 = vadd.f32 %v2155, %v2156
        %v2158 = vsel %vm265, %v2150, 0.0
        %v2159 = vadd.f32 %v2157, %v2158
        %v2160 = vld [vmem:[%s4] sm:$0x1]
        %v2162 = vlaneseq
        %v2163 = vshrl.u32 %v2162, 7
        %v2164 = vsub.s32 0, %v2163
        %v2165 = vrot.slane %v2160, %v2164
        %v2167 = vadd.f32 %v2159, %v2165
        %2168 = vst.msk [vmem:[%s215] sm:$0xff] %vm265, %v2167
        %s2169 = sand.u32 %s137, 1
        %s2170 = scalar_lea.sflag [#allocation3], %s2169
        %s2171 = sand.u32 %s137, 1
        %s2172 = smul.addr %s2171, 8
        %s2173 = scalar_lea.vmem [#allocation2], %s2172
        // Predicated region
        $region41: #{tpu_custom_call.1} parent=39 // pred_check
          %p2174 = pneg %p147
        $region42: #{tpu_custom_call.1} parent=39 // pred_check_branch
          %2176 = sbr.rel (%p2174) target = $region44
        $region43: #{tpu_custom_call.1} parent=39 // pred_region
          %s2178 = ssub.s32 128, 128
          %2179 = vsyncadd %s2170, %s2178
          %s2180 = smul.addr %s19, 128
          %s2181 = scalar_lea.hbm %s5, %s2180
          %s2183 = sshll.u32 %s2173, 4
          %s2184 = int_to_ptr.vmem [resolvable:$true] %s2183
          %2186 = dma.vmem_to_hbm [thread:$0]  %s2184, 128, %s2181, %s2170
        $region44: #{tpu_custom_call.1} parent=39 // pred_fallthru
          _
      $region40: #{tpu_custom_call.1} parent=5 // pred_fallthru
        _
      %p2187 = scmp.le.s32.totalorder 2, %s14
      // Predicated region
      $region45: #{tpu_custom_call.1} parent=5 // pred_check
        %p2188 = pneg %p2187
      $region46: #{tpu_custom_call.1} parent=5 // pred_check_branch
        %2190 = sbr.rel (%p2188) target = $region48
      $region47: #{tpu_custom_call.1} parent=5 // pred_region
        %s2191 = ssub.s32 %s14, 2
        // Predicated region
        $region49: #{tpu_custom_call.1} parent=47 // pred_check
          %p2192 = pneg %p153
        $region50: #{tpu_custom_call.1} parent=47 // pred_check_branch
          %2194 = sbr.rel (%p2192) target = $region52
        $region51: #{tpu_custom_call.1} parent=47 // pred_region
          %s2195 = sand.u32 %s138, 1
          %s2196 = scalar_lea.sflag [#allocation3], %s2195
          %s2197 = sand.u32 %s138, 1
          %s2198 = smul.addr %s2197, 8
          %s2199 = scalar_lea.vmem [#allocation2], %s2198
          %2200 = dma.done %s2196, 128
        $region52: #{tpu_custom_call.1} parent=47 // pred_fallthru
          _
      $region48: #{tpu_custom_call.1} parent=5 // pred_fallthru
        _
    $region6: #{tpu_custom_call.1} parent=1 // loop_footer
      %s18 = sadd.s32 1, %s14
    $region7: #{tpu_custom_call.1} parent=1 // loop_footer_branch
      %13 = sbr.rel target = $region3
    $region8: #{tpu_custom_call.1} parent=1 // loop_exit
      _
    %2201 = vsyncpa [#allocation3], 1
    %s2202 = scalar_lea.sflag [#allocation3], 1
    %2203 = vsyncpa %s2202, 1

</llo_original>
